<compile_context>
chip_gen: v6e
topology: v6e:2x2x1
jax: 0.10.0
libtpu: 0.0.40
codegen_flags: <defaults>
</compile_context>

<pallas_src>
import math

import numpy as np
import jax
import jax.numpy as jnp
from jax.experimental import pallas as pl
from jax.experimental.pallas import tpu as pltpu

# ----------------------------- configuration --------------------------------
NFEATURES = 4          # flattened data features
X_EMB = 32             # x_emb_size
T_EMB = 32             # time_emb_size
WIDTH = 64             # hidden_width
DEPTH = 2              # hidden_depth
TRANSFORMS = 3         # number of MAF transforms
F = 1 + NFEATURES      # flow features  (v_t ++ prev_t)
CTX = X_EMB + T_EMB    # flow context   (x_emb ++ t_emb)
BATCH = 2
LOG_SLOPE = math.log(1e-3)   # zuko MonotonicAffineTransform slope

# Slab packing relies on these coincidences of the configuration.
assert CTX == WIDTH, "64x64 slab packing assumes x_emb_size + time_emb_size == hidden_width"
assert F == NFEATURES + 1


# ------------------------------- kernel ---------------------------------------
def _silu(v):
    return v * jax.nn.sigmoid(v)


def fused_flow_kernel(xt_ref, y0_ref, w5_ref, w64_ref, wl_ref, b64_ref, bl_ref, out_ref):
    """Fused embedding + zuko-style MAF log_prob.

    Slab layouts (all weights pre-masked / pre-split / pre-transposed at build time):
      w5_ref  (1+T, 5, 64)   : [0] fused (x||t) embedding layer 0; [1+ti] MAF w0 y-part
      w64_ref (2+T*D, 64, 64): [0],[1] embedding layers 1,2 (block-diag);
                               [2+ti*D] MAF w0 ctx-part; [2+ti*D+m] MAF middle layers
      wl_ref  (2T, 64, 5)    : [ti] shift weights; [T+ti] raw-scale weights
      b64_ref (3+T*D, 1, 64) : [0..2] embedding biases; [3+ti*D+m] MAF hidden biases
      bl_ref  (2T, 1, 5)     : [ti] shift bias; [T+ti] raw-scale bias
    """
    # --- embedding: fused block-diagonal x_mlp || time_mlp (3x Linear + SiLU) ---
    h = _silu(jnp.dot(xt_ref[...], w5_ref[0], preferred_element_type=jnp.float32) + b64_ref[0])
    h = _silu(jnp.dot(h, w64_ref[0], preferred_element_type=jnp.float32) + b64_ref[1])
    ctx = _silu(jnp.dot(h, w64_ref[1], preferred_element_type=jnp.float32) + b64_ref[2])
    # ctx == concat([x_emb, t_emb], -1) because the fused weights are block-diagonal.

    # --- MAF log_prob (masked-autoregressive affine transforms) ---
    y = y0_ref[...]                                       # (B, F) = [v_t | prev_t]
    ladj = jnp.zeros((y.shape[0], 1), jnp.float32)
    for ti in range(TRANSFORMS):
        wi = 2 + ti * DEPTH
        bi = 3 + ti * DEPTH
        # first conditioner layer: split matmul, no [y|ctx] lane concat
        h = jnp.maximum(
            jnp.dot(y, w5_ref[1 + ti], preferred_element_type=jnp.float32)
            + jnp.dot(ctx, w64_ref[wi], preferred_element_type=jnp.float32)
            + b64_ref[bi], 0.0)
        for mi in range(1, DEPTH):
            h = jnp.maximum(
                jnp.dot(h, w64_ref[wi + mi], preferred_element_type=jnp.float32)
                + b64_ref[bi + mi], 0.0)
        # last conditioner layer pre-split into shift / raw-scale slabs
        shift = jnp.dot(h, wl_ref[ti], preferred_element_type=jnp.float32) + bl_ref[ti]
        raw = (jnp.dot(h, wl_ref[TRANSFORMS + ti], preferred_element_type=jnp.float32)
               + bl_ref[TRANSFORMS + ti])
        # MonotonicAffineTransform(slope=1e-3): soft-clamped log-scale
        log_scale = raw / (1.0 + jnp.abs(raw / LOG_SLOPE))
        y = y * jnp.exp(log_scale) + shift
        ladj = ladj + jnp.sum(log_scale, axis=-1, keepdims=True)

    # standard-normal diagonal base
    out_ref[...] = (-0.5 * jnp.sum(y * y, axis=-1, keepdims=True)
                    - 0.5 * F * math.log(2.0 * math.pi) + ladj)


# --------------------------- pallas_call wrapper -------------------------------
def nf_jumptime_forward(params, x_t, v_t, t, prev_t, E):
    del E  # E_mlp output is never consumed by forward() in the torch module (dead compute)
    B = x_t.shape[0]
    x_flat = x_t.reshape(B, -1).astype(jnp.float32)
    v_flat = v_t.reshape(B, -1).astype(jnp.float32)
    t2 = t.reshape(-1, 1).astype(jnp.float32)
    prev2 = prev_t.reshape(-1, 1).astype(jnp.float32)

    xt = jnp.concatenate([x_flat, t2], axis=-1)      # (B, NFEATURES+1) -> embedding input
    y0 = jnp.concatenate([v_flat, prev2], axis=-1)   # (B, F)           -> flow sample

    args = (xt, y0, params['w5'], params['w64'], params['wl'], params['b64'], params['bl'])
    # TODO(synk): for throughput, grow B to >=256 and add a parallel batch grid axis
    # (dimension_semantics=("parallel",)) so v7x's second TensorCore is engaged.
    logp = pl.pallas_call(
        fused_flow_kernel,
        in_specs=[pl.BlockSpec(memory_space=pltpu.MemorySpace.VMEM)] * len(args),
        out_specs=pl.BlockSpec(memory_space=pltpu.MemorySpace.VMEM),
        out_shape=jax.ShapeDtypeStruct((B, 1), jnp.float32),
    )(*args)
    return logp[:, 0]                                # (B,)


# ----------------------- deterministic parameter setup ------------------------
def _torch_linear_init(key, fan_in, fan_out):
    k = 1.0 / math.sqrt(fan_in)
    kw, kb = jax.random.split(key)
    W = jax.random.uniform(kw, (fan_out, fan_in), jnp.float32, -k, k)   # torch (out, in)
    b = jax.random.uniform(kb, (fan_out,), jnp.float32, -k, k)
    return np.asarray(W), np.asarray(b)


def _zuko_masked_mlp_masks(adjacency, hidden_features):
    """Reproduce zuko.nn.MaskedMLP mask construction (MADE-style)."""
    adjacency = np.asarray(adjacency, dtype=bool)
    out_features, in_features = adjacency.shape
    A_unique, inverse = np.unique(adjacency, axis=0, return_inverse=True)
    inverse = np.asarray(inverse).reshape(-1)
    Ai = A_unique.astype(np.int64)
    precedence = (Ai @ Ai.T) == Ai.sum(axis=-1)   # [i, j] = A_j subset of A_i

    sizes_out = list(hidden_features) + [out_features]
    n_layers = len(sizes_out)
    masks, indices = [], None
    for li in range(n_layers):
        mask = A_unique if li == 0 else precedence[:, indices]
        if li < n_layers - 1:
            reachable = np.nonzero(mask.sum(axis=-1))[0]
            indices = reachable[np.arange(sizes_out[li]) % len(reachable)]
            mask = mask[indices]
        else:
            mask = mask[inverse]
        masks.append(mask.astype(np.float32))     # torch convention (out, in)
    return masks


def build_params(key):
    keys = jax.random.split(key, 64)
    kit = iter(keys)

    def linear(fan_in, fan_out):
        return _torch_linear_init(next(kit), fan_in, fan_out)

    # ---- fused block-diagonal embedding: x_mlp (4->32->32->32) || time_mlp (1->32->32->32)
    Wx, bx = zip(*[linear(d_in, d_out) for d_in, d_out in
                   [(NFEATURES, X_EMB), (X_EMB, X_EMB), (X_EMB, X_EMB)]])
    Wt, bt = zip(*[linear(d_in, d_out) for d_in, d_out in
                   [(1, T_EMB), (T_EMB, T_EMB), (T_EMB, T_EMB)]])
    # (E_mlp weights are not built: its output is never consumed by forward().)

    we0 = np.zeros((NFEATURES + 1, CTX), np.float32)         # layer 0: (5, 64)
    we0[:NFEATURES, :X_EMB] = Wx[0].T
    we0[NFEATURES:, X_EMB:] = Wt[0].T
    we12 = []
    for i in (1, 2):
        w = np.zeros((CTX, CTX), np.float32)
        w[:X_EMB, :X_EMB] = Wx[i].T
        w[X_EMB:, X_EMB:] = Wt[i].T
        we12.append(w)
    be = [np.concatenate([bx[i], bt[i]]).reshape(1, -1) for i in range(3)]

    # ---- MAF masked conditioners (pre-masked, pre-split, stacked over transforms) ----
    hidden = [WIDTH] * DEPTH
    dims = [(F + CTX, WIDTH)] + [(WIDTH, WIDTH)] * (DEPTH - 1) + [(WIDTH, 2 * F)]
    perm = np.concatenate([np.arange(0, 2 * F, 2), np.arange(1, 2 * F, 2)])  # deinterleave

    w5_list = [we0]                       # (5, 64) slabs
    w64_list = list(we12)                 # (64, 64) slabs
    b64_list = list(be)                   # (1, 64) slabs
    wl_shift, wl_scale, bl_shift, bl_scale = [], [], [], []

    for ti in range(TRANSFORMS):
        order = np.arange(F) if ti % 2 == 0 else np.arange(F)[::-1].copy()   # zuko alternation
        in_order = np.concatenate([order, -np.ones(CTX, dtype=np.int64)])    # [y | ctx]
        out_order = np.repeat(order, 2)
        adjacency = out_order[:, None] > in_order[None, :]
        masks = _zuko_masked_mlp_masks(adjacency, hidden)

        ws, bs = [], []
        for (din, dout), m in zip(dims, masks):
            W, b = linear(din, dout)
            ws.append(W * m)              # apply MADE mask once, at setup time
            bs.append(b)

        W0 = ws[0].T                      # (F + CTX, WIDTH); rows [:F] act on y, [F:] on ctx
        w5_list.append(np.ascontiguousarray(W0[:F, :]))
        w64_list.append(np.ascontiguousarray(W0[F:, :]))
        b64_list.append(bs[0].reshape(1, -1))
        for mi in range(1, DEPTH):
            w64_list.append(ws[mi].T)
            b64_list.append(bs[mi].reshape(1, -1))

        Wl = ws[-1][perm, :]              # shifts first, then raw scales
        bl = bs[-1][perm]
        wl_shift.append(np.ascontiguousarray(Wl[:F, :].T))   # (WIDTH, F)
        wl_scale.append(np.ascontiguousarray(Wl[F:, :].T))
        bl_shift.append(bl[:F].reshape(1, -1))
        bl_scale.append(bl[F:].reshape(1, -1))

    return dict(
        w5=jnp.asarray(np.stack(w5_list)),                    # (1+T, 5, 64)
        w64=jnp.asarray(np.stack(w64_list)),                  # (2+T*D, 64, 64)
        wl=jnp.asarray(np.stack(wl_shift + wl_scale)),        # (2T, 64, 5)
        b64=jnp.asarray(np.stack(b64_list)),                  # (3+T*D, 1, 64)
        bl=jnp.asarray(np.stack(bl_shift + bl_scale)),        # (2T, 1, 5)
    )


# TODO(synk): model_type='NSF' (rational-quadratic splines) and .sample() (sequential
# autoregressive inversion + RNG) are not implemented; only the MAF forward/log_prob path is.

# ----------------------------------- main -------------------------------------
if __name__ == "__main__":
    key = jax.random.PRNGKey(0)
    kp, kx, kv, kt, kpt, kE = jax.random.split(key, 6)

    params = build_params(kp)
    x_t = jax.random.normal(kx, (BATCH, NFEATURES), jnp.float32)
    v_t = jax.random.normal(kv, (BATCH, NFEATURES), jnp.float32)
    t = jax.random.uniform(kt, (BATCH,), jnp.float32)
    prev_t = jax.random.uniform(kpt, (BATCH,), jnp.float32)
    E = jax.random.uniform(kE, (BATCH,), jnp.float32)

    fwd = jax.jit(nf_jumptime_forward)
    log_p = fwd(params, x_t, v_t, t, prev_t, E)
    jax.block_until_ready(log_p)

    assert log_p.shape == (BATCH,), log_p.shape
    assert bool(jnp.all(jnp.isfinite(log_p)))
    print("KERNEL_OK")
</pallas_src>

<mosaic_0001>
module attributes {stable_mosaic.version = 11 : i64} {
  func.func @fused_flow_kernel(%arg0: memref<2x5xf32, #tpu.memory_space<vmem>>, %arg1: memref<2x5xf32, #tpu.memory_space<vmem>>, %arg2: memref<4x5x64xf32, #tpu.memory_space<vmem>>, %arg3: memref<8x64x64xf32, #tpu.memory_space<vmem>>, %arg4: memref<6x64x5xf32, #tpu.memory_space<vmem>>, %arg5: memref<9x1x64xf32, #tpu.memory_space<vmem>>, %arg6: memref<6x1x5xf32, #tpu.memory_space<vmem>>, %arg7: memref<2x1xf32, #tpu.memory_space<vmem>>) attributes {dimension_semantics = [], scalar_prefetch = 0 : i64, scratch_operands = 0 : i64, tpu.core_type = #tpu.core_type<tc>} {
    %c0 = arith.constant 0 : index
    %c0_0 = arith.constant 0 : index
    %0 = vector.load %arg0[%c0, %c0_0] : memref<2x5xf32, #tpu.memory_space<vmem>>, vector<2x5xf32>
    %c0_1 = arith.constant 0 : index
    %c0_2 = arith.constant 0 : index
    %c0_3 = arith.constant 0 : index
    %1 = vector.load %arg2[%c0_1, %c0_2, %c0_3] : memref<4x5x64xf32, #tpu.memory_space<vmem>>, vector<1x5x64xf32>
    %2 = vector.shape_cast %1 : vector<1x5x64xf32> to vector<5x64xf32>
    %cst = arith.constant dense<0.000000e+00> : vector<2x64xf32>
    %3 = tpu.matmul %0, %2, %cst {dimension_numbers = #tpu.dot_dimension_numbers<[1], [0], [0], [1], [0, 0, 1, 1], [], []>} : vector<2x5xf32>, vector<5x64xf32>, vector<2x64xf32> -> vector<2x64xf32>
    %c0_4 = arith.constant 0 : index
    %c0_5 = arith.constant 0 : index
    %c0_6 = arith.constant 0 : index
    %4 = vector.load %arg5[%c0_4, %c0_5, %c0_6] : memref<9x1x64xf32, #tpu.memory_space<vmem>>, vector<1x1x64xf32>
    %5 = vector.shape_cast %4 : vector<1x1x64xf32> to vector<1x64xf32>
    %6 = vector.broadcast %5 : vector<1x64xf32> to vector<2x64xf32>
    %7 = arith.addf %3, %6 : vector<2x64xf32>
    %8 = arith.negf %7 : vector<2x64xf32>
    %9 = math.exp %8 : vector<2x64xf32>
    %cst_7 = arith.constant 1.000000e+00 : f32
    %10 = vector.broadcast %cst_7 : f32 to vector<2x64xf32>
    %11 = arith.addf %10, %9 : vector<2x64xf32>
    %12 = arith.divf %10, %11 : vector<2x64xf32>
    %13 = arith.mulf %7, %12 : vector<2x64xf32>
    %c0_8 = arith.constant 0 : index
    %c0_9 = arith.constant 0 : index
    %c0_10 = arith.constant 0 : index
    %14 = vector.load %arg3[%c0_8, %c0_9, %c0_10] : memref<8x64x64xf32, #tpu.memory_space<vmem>>, vector<1x64x64xf32>
    %15 = vector.shape_cast %14 : vector<1x64x64xf32> to vector<64x64xf32>
    %cst_11 = arith.constant dense<0.000000e+00> : vector<2x64xf32>
    %16 = tpu.matmul %13, %15, %cst_11 {dimension_numbers = #tpu.dot_dimension_numbers<[1], [0], [0], [1], [0, 0, 1, 1], [], []>} : vector<2x64xf32>, vector<64x64xf32>, vector<2x64xf32> -> vector<2x64xf32>
    %c1 = arith.constant 1 : index
    %c0_12 = arith.constant 0 : index
    %c0_13 = arith.constant 0 : index
    %17 = vector.load %arg5[%c1, %c0_12, %c0_13] : memref<9x1x64xf32, #tpu.memory_space<vmem>>, vector<1x1x64xf32>
    %18 = vector.shape_cast %17 : vector<1x1x64xf32> to vector<1x64xf32>
    %19 = vector.broadcast %18 : vector<1x64xf32> to vector<2x64xf32>
    %20 = arith.addf %16, %19 : vector<2x64xf32>
    %21 = arith.negf %20 : vector<2x64xf32>
    %22 = math.exp %21 : vector<2x64xf32>
    %cst_14 = arith.constant 1.000000e+00 : f32
    %23 = vector.broadcast %cst_14 : f32 to vector<2x64xf32>
    %24 = arith.addf %23, %22 : vector<2x64xf32>
    %25 = arith.divf %23, %24 : vector<2x64xf32>
    %26 = arith.mulf %20, %25 : vector<2x64xf32>
    %c1_15 = arith.constant 1 : index
    %c0_16 = arith.constant 0 : index
    %c0_17 = arith.constant 0 : index
    %27 = vector.load %arg3[%c1_15, %c0_16, %c0_17] : memref<8x64x64xf32, #tpu.memory_space<vmem>>, vector<1x64x64xf32>
    %28 = vector.shape_cast %27 : vector<1x64x64xf32> to vector<64x64xf32>
    %cst_18 = arith.constant dense<0.000000e+00> : vector<2x64xf32>
    %29 = tpu.matmul %26, %28, %cst_18 {dimension_numbers = #tpu.dot_dimension_numbers<[1], [0], [0], [1], [0, 0, 1, 1], [], []>} : vector<2x64xf32>, vector<64x64xf32>, vector<2x64xf32> -> vector<2x64xf32>
    %c2 = arith.constant 2 : index
    %c0_19 = arith.constant 0 : index
    %c0_20 = arith.constant 0 : index
    %30 = vector.load %arg5[%c2, %c0_19, %c0_20] : memref<9x1x64xf32, #tpu.memory_space<vmem>>, vector<1x1x64xf32>
    %31 = vector.shape_cast %30 : vector<1x1x64xf32> to vector<1x64xf32>
    %32 = vector.broadcast %31 : vector<1x64xf32> to vector<2x64xf32>
    %33 = arith.addf %29, %32 : vector<2x64xf32>
    %34 = arith.negf %33 : vector<2x64xf32>
    %35 = math.exp %34 : vector<2x64xf32>
    %cst_21 = arith.constant 1.000000e+00 : f32
    %36 = vector.broadcast %cst_21 : f32 to vector<2x64xf32>
    %37 = arith.addf %36, %35 : vector<2x64xf32>
    %38 = arith.divf %36, %37 : vector<2x64xf32>
    %39 = arith.mulf %33, %38 : vector<2x64xf32>
    %c0_22 = arith.constant 0 : index
    %c0_23 = arith.constant 0 : index
    %40 = vector.load %arg1[%c0_22, %c0_23] : memref<2x5xf32, #tpu.memory_space<vmem>>, vector<2x5xf32>
    %cst_24 = arith.constant 0.000000e+00 : f32
    %41 = vector.broadcast %cst_24 : f32 to vector<2x1xf32>
    %c1_25 = arith.constant 1 : index
    %c0_26 = arith.constant 0 : index
    %c0_27 = arith.constant 0 : index
    %42 = vector.load %arg2[%c1_25, %c0_26, %c0_27] : memref<4x5x64xf32, #tpu.memory_space<vmem>>, vector<1x5x64xf32>
    %43 = vector.shape_cast %42 : vector<1x5x64xf32> to vector<5x64xf32>
    %cst_28 = arith.constant dense<0.000000e+00> : vector<2x64xf32>
    %44 = tpu.matmul %40, %43, %cst_28 {dimension_numbers = #tpu.dot_dimension_numbers<[1], [0], [0], [1], [0, 0, 1, 1], [], []>} : vector<2x5xf32>, vector<5x64xf32>, vector<2x64xf32> -> vector<2x64xf32>
    %c2_29 = arith.constant 2 : index
    %c0_30 = arith.constant 0 : index
    %c0_31 = arith.constant 0 : index
    %45 = vector.load %arg3[%c2_29, %c0_30, %c0_31] : memref<8x64x64xf32, #tpu.memory_space<vmem>>, vector<1x64x64xf32>
    %46 = vector.shape_cast %45 : vector<1x64x64xf32> to vector<64x64xf32>
    %cst_32 = arith.constant dense<0.000000e+00> : vector<2x64xf32>
    %47 = tpu.matmul %39, %46, %cst_32 {dimension_numbers = #tpu.dot_dimension_numbers<[1], [0], [0], [1], [0, 0, 1, 1], [], []>} : vector<2x64xf32>, vector<64x64xf32>, vector<2x64xf32> -> vector<2x64xf32>
    %48 = arith.addf %44, %47 : vector<2x64xf32>
    %c3 = arith.constant 3 : index
    %c0_33 = arith.constant 0 : index
    %c0_34 = arith.constant 0 : index
    %49 = vector.load %arg5[%c3, %c0_33, %c0_34] : memref<9x1x64xf32, #tpu.memory_space<vmem>>, vector<1x1x64xf32>
    %50 = vector.shape_cast %49 : vector<1x1x64xf32> to vector<1x64xf32>
    %51 = vector.broadcast %50 : vector<1x64xf32> to vector<2x64xf32>
    %52 = arith.addf %48, %51 : vector<2x64xf32>
    %cst_35 = arith.constant 0.000000e+00 : f32
    %53 = vector.broadcast %cst_35 : f32 to vector<2x64xf32>
    %54 = arith.maximumf %52, %53 : vector<2x64xf32>
    %c3_36 = arith.constant 3 : index
    %c0_37 = arith.constant 0 : index
    %c0_38 = arith.constant 0 : index
    %55 = vector.load %arg3[%c3_36, %c0_37, %c0_38] : memref<8x64x64xf32, #tpu.memory_space<vmem>>, vector<1x64x64xf32>
    %56 = vector.shape_cast %55 : vector<1x64x64xf32> to vector<64x64xf32>
    %cst_39 = arith.constant dense<0.000000e+00> : vector<2x64xf32>
    %57 = tpu.matmul %54, %56, %cst_39 {dimension_numbers = #tpu.dot_dimension_numbers<[1], [0], [0], [1], [0, 0, 1, 1], [], []>} : vector<2x64xf32>, vector<64x64xf32>, vector<2x64xf32> -> vector<2x64xf32>
    %c4 = arith.constant 4 : index
    %c0_40 = arith.constant 0 : index
    %c0_41 = arith.constant 0 : index
    %58 = vector.load %arg5[%c4, %c0_40, %c0_41] : memref<9x1x64xf32, #tpu.memory_space<vmem>>, vector<1x1x64xf32>
    %59 = vector.shape_cast %58 : vector<1x1x64xf32> to vector<1x64xf32>
    %60 = vector.broadcast %59 : vector<1x64xf32> to vector<2x64xf32>
    %61 = arith.addf %57, %60 : vector<2x64xf32>
    %cst_42 = arith.constant 0.000000e+00 : f32
    %62 = vector.broadcast %cst_42 : f32 to vector<2x64xf32>
    %63 = arith.maximumf %61, %62 : vector<2x64xf32>
    %c0_43 = arith.constant 0 : index
    %c0_44 = arith.constant 0 : index
    %c0_45 = arith.constant 0 : index
    %64 = vector.load %arg4[%c0_43, %c0_44, %c0_45] : memref<6x64x5xf32, #tpu.memory_space<vmem>>, vector<1x64x5xf32>
    %65 = vector.shape_cast %64 : vector<1x64x5xf32> to vector<64x5xf32>
    %cst_46 = arith.constant dense<0.000000e+00> : vector<2x5xf32>
    %66 = tpu.matmul %63, %65, %cst_46 {dimension_numbers = #tpu.dot_dimension_numbers<[1], [0], [0], [1], [0, 0, 1, 1], [], []>} : vector<2x64xf32>, vector<64x5xf32>, vector<2x5xf32> -> vector<2x5xf32>
    %c0_47 = arith.constant 0 : index
    %c0_48 = arith.constant 0 : index
    %c0_49 = arith.constant 0 : index
    %67 = vector.load %arg6[%c0_47, %c0_48, %c0_49] : memref<6x1x5xf32, #tpu.memory_space<vmem>>, vector<1x1x5xf32>
    %68 = vector.shape_cast %67 : vector<1x1x5xf32> to vector<1x5xf32>
    %69 = vector.broadcast %68 : vector<1x5xf32> to vector<2x5xf32>
    %70 = arith.addf %66, %69 : vector<2x5xf32>
    %c3_50 = arith.constant 3 : index
    %c0_51 = arith.constant 0 : index
    %c0_52 = arith.constant 0 : index
    %71 = vector.load %arg4[%c3_50, %c0_51, %c0_52] : memref<6x64x5xf32, #tpu.memory_space<vmem>>, vector<1x64x5xf32>
    %72 = vector.shape_cast %71 : vector<1x64x5xf32> to vector<64x5xf32>
    %cst_53 = arith.constant dense<0.000000e+00> : vector<2x5xf32>
    %73 = tpu.matmul %63, %72, %cst_53 {dimension_numbers = #tpu.dot_dimension_numbers<[1], [0], [0], [1], [0, 0, 1, 1], [], []>} : vector<2x64xf32>, vector<64x5xf32>, vector<2x5xf32> -> vector<2x5xf32>
    %c3_54 = arith.constant 3 : index
    %c0_55 = arith.constant 0 : index
    %c0_56 = arith.constant 0 : index
    %74 = vector.load %arg6[%c3_54, %c0_55, %c0_56] : memref<6x1x5xf32, #tpu.memory_space<vmem>>, vector<1x1x5xf32>
    %75 = vector.shape_cast %74 : vector<1x1x5xf32> to vector<1x5xf32>
    %76 = vector.broadcast %75 : vector<1x5xf32> to vector<2x5xf32>
    %77 = arith.addf %73, %76 : vector<2x5xf32>
    %cst_57 = arith.constant -6.90775537 : f32
    %78 = vector.broadcast %cst_57 : f32 to vector<2x5xf32>
    %79 = arith.divf %77, %78 : vector<2x5xf32>
    %80 = math.absf %79 : vector<2x5xf32>
    %cst_58 = arith.constant 1.000000e+00 : f32
    %81 = vector.broadcast %cst_58 : f32 to vector<2x5xf32>
    %82 = arith.addf %81, %80 : vector<2x5xf32>
    %83 = arith.divf %77, %82 : vector<2x5xf32>
    %84 = math.exp %83 : vector<2x5xf32>
    %85 = arith.mulf %40, %84 : vector<2x5xf32>
    %86 = arith.addf %85, %70 : vector<2x5xf32>
    %cst_59 = arith.constant dense<0.000000e+00> : vector<2xf32>
    %87 = vector.multi_reduction <add>, %83, %cst_59 [1] : vector<2x5xf32> to vector<2xf32>
    %88 = vector.shape_cast %87 : vector<2xf32> to vector<2x1xf32>
    %89 = arith.addf %41, %88 : vector<2x1xf32>
    %c2_60 = arith.constant 2 : index
    %c0_61 = arith.constant 0 : index
    %c0_62 = arith.constant 0 : index
    %90 = vector.load %arg2[%c2_60, %c0_61, %c0_62] : memref<4x5x64xf32, #tpu.memory_space<vmem>>, vector<1x5x64xf32>
    %91 = vector.shape_cast %90 : vector<1x5x64xf32> to vector<5x64xf32>
    %cst_63 = arith.constant dense<0.000000e+00> : vector<2x64xf32>
    %92 = tpu.matmul %86, %91, %cst_63 {dimension_numbers = #tpu.dot_dimension_numbers<[1], [0], [0], [1], [0, 0, 1, 1], [], []>} : vector<2x5xf32>, vector<5x64xf32>, vector<2x64xf32> -> vector<2x64xf32>
    %c4_64 = arith.constant 4 : index
    %c0_65 = arith.constant 0 : index
    %c0_66 = arith.constant 0 : index
    %93 = vector.load %arg3[%c4_64, %c0_65, %c0_66] : memref<8x64x64xf32, #tpu.memory_space<vmem>>, vector<1x64x64xf32>
    %94 = vector.shape_cast %93 : vector<1x64x64xf32> to vector<64x64xf32>
    %cst_67 = arith.constant dense<0.000000e+00> : vector<2x64xf32>
    %95 = tpu.matmul %39, %94, %cst_67 {dimension_numbers = #tpu.dot_dimension_numbers<[1], [0], [0], [1], [0, 0, 1, 1], [], []>} : vector<2x64xf32>, vector<64x64xf32>, vector<2x64xf32> -> vector<2x64xf32>
    %96 = arith.addf %92, %95 : vector<2x64xf32>
    %c5 = arith.constant 5 : index
    %c0_68 = arith.constant 0 : index
    %c0_69 = arith.constant 0 : index
    %97 = vector.load %arg5[%c5, %c0_68, %c0_69] : memref<9x1x64xf32, #tpu.memory_space<vmem>>, vector<1x1x64xf32>
    %98 = vector.shape_cast %97 : vector<1x1x64xf32> to vector<1x64xf32>
    %99 = vector.broadcast %98 : vector<1x64xf32> to vector<2x64xf32>
    %100 = arith.addf %96, %99 : vector<2x64xf32>
    %cst_70 = arith.constant 0.000000e+00 : f32
    %101 = vector.broadcast %cst_70 : f32 to vector<2x64xf32>
    %102 = arith.maximumf %100, %101 : vector<2x64xf32>
    %c5_71 = arith.constant 5 : index
    %c0_72 = arith.constant 0 : index
    %c0_73 = arith.constant 0 : index
    %103 = vector.load %arg3[%c5_71, %c0_72, %c0_73] : memref<8x64x64xf32, #tpu.memory_space<vmem>>, vector<1x64x64xf32>
    %104 = vector.shape_cast %103 : vector<1x64x64xf32> to vector<64x64xf32>
    %cst_74 = arith.constant dense<0.000000e+00> : vector<2x64xf32>
    %105 = tpu.matmul %102, %104, %cst_74 {dimension_numbers = #tpu.dot_dimension_numbers<[1], [0], [0], [1], [0, 0, 1, 1], [], []>} : vector<2x64xf32>, vector<64x64xf32>, vector<2x64xf32> -> vector<2x64xf32>
    %c6 = arith.constant 6 : index
    %c0_75 = arith.constant 0 : index
    %c0_76 = arith.constant 0 : index
    %106 = vector.load %arg5[%c6, %c0_75, %c0_76] : memref<9x1x64xf32, #tpu.memory_space<vmem>>, vector<1x1x64xf32>
    %107 = vector.shape_cast %106 : vector<1x1x64xf32> to vector<1x64xf32>
    %108 = vector.broadcast %107 : vector<1x64xf32> to vector<2x64xf32>
    %109 = arith.addf %105, %108 : vector<2x64xf32>
    %cst_77 = arith.constant 0.000000e+00 : f32
    %110 = vector.broadcast %cst_77 : f32 to vector<2x64xf32>
    %111 = arith.maximumf %109, %110 : vector<2x64xf32>
    %c1_78 = arith.constant 1 : index
    %c0_79 = arith.constant 0 : index
    %c0_80 = arith.constant 0 : index
    %112 = vector.load %arg4[%c1_78, %c0_79, %c0_80] : memref<6x64x5xf32, #tpu.memory_space<vmem>>, vector<1x64x5xf32>
    %113 = vector.shape_cast %112 : vector<1x64x5xf32> to vector<64x5xf32>
    %cst_81 = arith.constant dense<0.000000e+00> : vector<2x5xf32>
    %114 = tpu.matmul %111, %113, %cst_81 {dimension_numbers = #tpu.dot_dimension_numbers<[1], [0], [0], [1], [0, 0, 1, 1], [], []>} : vector<2x64xf32>, vector<64x5xf32>, vector<2x5xf32> -> vector<2x5xf32>
    %c1_82 = arith.constant 1 : index
    %c0_83 = arith.constant 0 : index
    %c0_84 = arith.constant 0 : index
    %115 = vector.load %arg6[%c1_82, %c0_83, %c0_84] : memref<6x1x5xf32, #tpu.memory_space<vmem>>, vector<1x1x5xf32>
    %116 = vector.shape_cast %115 : vector<1x1x5xf32> to vector<1x5xf32>
    %117 = vector.broadcast %116 : vector<1x5xf32> to vector<2x5xf32>
    %118 = arith.addf %114, %117 : vector<2x5xf32>
    %c4_85 = arith.constant 4 : index
    %c0_86 = arith.constant 0 : index
    %c0_87 = arith.constant 0 : index
    %119 = vector.load %arg4[%c4_85, %c0_86, %c0_87] : memref<6x64x5xf32, #tpu.memory_space<vmem>>, vector<1x64x5xf32>
    %120 = vector.shape_cast %119 : vector<1x64x5xf32> to vector<64x5xf32>
    %cst_88 = arith.constant dense<0.000000e+00> : vector<2x5xf32>
    %121 = tpu.matmul %111, %120, %cst_88 {dimension_numbers = #tpu.dot_dimension_numbers<[1], [0], [0], [1], [0, 0, 1, 1], [], []>} : vector<2x64xf32>, vector<64x5xf32>, vector<2x5xf32> -> vector<2x5xf32>
    %c4_89 = arith.constant 4 : index
    %c0_90 = arith.constant 0 : index
    %c0_91 = arith.constant 0 : index
    %122 = vector.load %arg6[%c4_89, %c0_90, %c0_91] : memref<6x1x5xf32, #tpu.memory_space<vmem>>, vector<1x1x5xf32>
    %123 = vector.shape_cast %122 : vector<1x1x5xf32> to vector<1x5xf32>
    %124 = vector.broadcast %123 : vector<1x5xf32> to vector<2x5xf32>
    %125 = arith.addf %121, %124 : vector<2x5xf32>
    %cst_92 = arith.constant -6.90775537 : f32
    %126 = vector.broadcast %cst_92 : f32 to vector<2x5xf32>
    %127 = arith.divf %125, %126 : vector<2x5xf32>
    %128 = math.absf %127 : vector<2x5xf32>
    %cst_93 = arith.constant 1.000000e+00 : f32
    %129 = vector.broadcast %cst_93 : f32 to vector<2x5xf32>
    %130 = arith.addf %129, %128 : vector<2x5xf32>
    %131 = arith.divf %125, %130 : vector<2x5xf32>
    %132 = math.exp %131 : vector<2x5xf32>
    %133 = arith.mulf %86, %132 : vector<2x5xf32>
    %134 = arith.addf %133, %118 : vector<2x5xf32>
    %cst_94 = arith.constant dense<0.000000e+00> : vector<2xf32>
    %135 = vector.multi_reduction <add>, %131, %cst_94 [1] : vector<2x5xf32> to vector<2xf32>
    %136 = vector.shape_cast %135 : vector<2xf32> to vector<2x1xf32>
    %137 = arith.addf %89, %136 : vector<2x1xf32>
    %c3_95 = arith.constant 3 : index
    %c0_96 = arith.constant 0 : index
    %c0_97 = arith.constant 0 : index
    %138 = vector.load %arg2[%c3_95, %c0_96, %c0_97] : memref<4x5x64xf32, #tpu.memory_space<vmem>>, vector<1x5x64xf32>
    %139 = vector.shape_cast %138 : vector<1x5x64xf32> to vector<5x64xf32>
    %cst_98 = arith.constant dense<0.000000e+00> : vector<2x64xf32>
    %140 = tpu.matmul %134, %139, %cst_98 {dimension_numbers = #tpu.dot_dimension_numbers<[1], [0], [0], [1], [0, 0, 1, 1], [], []>} : vector<2x5xf32>, vector<5x64xf32>, vector<2x64xf32> -> vector<2x64xf32>
    %c6_99 = arith.constant 6 : index
    %c0_100 = arith.constant 0 : index
    %c0_101 = arith.constant 0 : index
    %141 = vector.load %arg3[%c6_99, %c0_100, %c0_101] : memref<8x64x64xf32, #tpu.memory_space<vmem>>, vector<1x64x64xf32>
    %142 = vector.shape_cast %141 : vector<1x64x64xf32> to vector<64x64xf32>
    %cst_102 = arith.constant dense<0.000000e+00> : vector<2x64xf32>
    %143 = tpu.matmul %39, %142, %cst_102 {dimension_numbers = #tpu.dot_dimension_numbers<[1], [0], [0], [1], [0, 0, 1, 1], [], []>} : vector<2x64xf32>, vector<64x64xf32>, vector<2x64xf32> -> vector<2x64xf32>
    %144 = arith.addf %140, %143 : vector<2x64xf32>
    %c7 = arith.constant 7 : index
    %c0_103 = arith.constant 0 : index
    %c0_104 = arith.constant 0 : index
    %145 = vector.load %arg5[%c7, %c0_103, %c0_104] : memref<9x1x64xf32, #tpu.memory_space<vmem>>, vector<1x1x64xf32>
    %146 = vector.shape_cast %145 : vector<1x1x64xf32> to vector<1x64xf32>
    %147 = vector.broadcast %146 : vector<1x64xf32> to vector<2x64xf32>
    %148 = arith.addf %144, %147 : vector<2x64xf32>
    %cst_105 = arith.constant 0.000000e+00 : f32
    %149 = vector.broadcast %cst_105 : f32 to vector<2x64xf32>
    %150 = arith.maximumf %148, %149 : vector<2x64xf32>
    %c7_106 = arith.constant 7 : index
    %c0_107 = arith.constant 0 : index
    %c0_108 = arith.constant 0 : index
    %151 = vector.load %arg3[%c7_106, %c0_107, %c0_108] : memref<8x64x64xf32, #tpu.memory_space<vmem>>, vector<1x64x64xf32>
    %152 = vector.shape_cast %151 : vector<1x64x64xf32> to vector<64x64xf32>
    %cst_109 = arith.constant dense<0.000000e+00> : vector<2x64xf32>
    %153 = tpu.matmul %150, %152, %cst_109 {dimension_numbers = #tpu.dot_dimension_numbers<[1], [0], [0], [1], [0, 0, 1, 1], [], []>} : vector<2x64xf32>, vector<64x64xf32>, vector<2x64xf32> -> vector<2x64xf32>
    %c8 = arith.constant 8 : index
    %c0_110 = arith.constant 0 : index
    %c0_111 = arith.constant 0 : index
    %154 = vector.load %arg5[%c8, %c0_110, %c0_111] : memref<9x1x64xf32, #tpu.memory_space<vmem>>, vector<1x1x64xf32>
    %155 = vector.shape_cast %154 : vector<1x1x64xf32> to vector<1x64xf32>
    %156 = vector.broadcast %155 : vector<1x64xf32> to vector<2x64xf32>
    %157 = arith.addf %153, %156 : vector<2x64xf32>
    %cst_112 = arith.constant 0.000000e+00 : f32
    %158 = vector.broadcast %cst_112 : f32 to vector<2x64xf32>
    %159 = arith.maximumf %157, %158 : vector<2x64xf32>
    %c2_113 = arith.constant 2 : index
    %c0_114 = arith.constant 0 : index
    %c0_115 = arith.constant 0 : index
    %160 = vector.load %arg4[%c2_113, %c0_114, %c0_115] : memref<6x64x5xf32, #tpu.memory_space<vmem>>, vector<1x64x5xf32>
    %161 = vector.shape_cast %160 : vector<1x64x5xf32> to vector<64x5xf32>
    %cst_116 = arith.constant dense<0.000000e+00> : vector<2x5xf32>
    %162 = tpu.matmul %159, %161, %cst_116 {dimension_numbers = #tpu.dot_dimension_numbers<[1], [0], [0], [1], [0, 0, 1, 1], [], []>} : vector<2x64xf32>, vector<64x5xf32>, vector<2x5xf32> -> vector<2x5xf32>
    %c2_117 = arith.constant 2 : index
    %c0_118 = arith.constant 0 : index
    %c0_119 = arith.constant 0 : index
    %163 = vector.load %arg6[%c2_117, %c0_118, %c0_119] : memref<6x1x5xf32, #tpu.memory_space<vmem>>, vector<1x1x5xf32>
    %164 = vector.shape_cast %163 : vector<1x1x5xf32> to vector<1x5xf32>
    %165 = vector.broadcast %164 : vector<1x5xf32> to vector<2x5xf32>
    %166 = arith.addf %162, %165 : vector<2x5xf32>
    %c5_120 = arith.constant 5 : index
    %c0_121 = arith.constant 0 : index
    %c0_122 = arith.constant 0 : index
    %167 = vector.load %arg4[%c5_120, %c0_121, %c0_122] : memref<6x64x5xf32, #tpu.memory_space<vmem>>, vector<1x64x5xf32>
    %168 = vector.shape_cast %167 : vector<1x64x5xf32> to vector<64x5xf32>
    %cst_123 = arith.constant dense<0.000000e+00> : vector<2x5xf32>
    %169 = tpu.matmul %159, %168, %cst_123 {dimension_numbers = #tpu.dot_dimension_numbers<[1], [0], [0], [1], [0, 0, 1, 1], [], []>} : vector<2x64xf32>, vector<64x5xf32>, vector<2x5xf32> -> vector<2x5xf32>
    %c5_124 = arith.constant 5 : index
    %c0_125 = arith.constant 0 : index
    %c0_126 = arith.constant 0 : index
    %170 = vector.load %arg6[%c5_124, %c0_125, %c0_126] : memref<6x1x5xf32, #tpu.memory_space<vmem>>, vector<1x1x5xf32>
    %171 = vector.shape_cast %170 : vector<1x1x5xf32> to vector<1x5xf32>
    %172 = vector.broadcast %171 : vector<1x5xf32> to vector<2x5xf32>
    %173 = arith.addf %169, %172 : vector<2x5xf32>
    %cst_127 = arith.constant -6.90775537 : f32
    %174 = vector.broadcast %cst_127 : f32 to vector<2x5xf32>
    %175 = arith.divf %173, %174 : vector<2x5xf32>
    %176 = math.absf %175 : vector<2x5xf32>
    %cst_128 = arith.constant 1.000000e+00 : f32
    %177 = vector.broadcast %cst_128 : f32 to vector<2x5xf32>
    %178 = arith.addf %177, %176 : vector<2x5xf32>
    %179 = arith.divf %173, %178 : vector<2x5xf32>
    %180 = math.exp %179 : vector<2x5xf32>
    %181 = arith.mulf %134, %180 : vector<2x5xf32>
    %182 = arith.addf %181, %166 : vector<2x5xf32>
    %cst_129 = arith.constant dense<0.000000e+00> : vector<2xf32>
    %183 = vector.multi_reduction <add>, %179, %cst_129 [1] : vector<2x5xf32> to vector<2xf32>
    %184 = vector.shape_cast %183 : vector<2xf32> to vector<2x1xf32>
    %185 = arith.addf %137, %184 : vector<2x1xf32>
    %186 = arith.mulf %182, %182 : vector<2x5xf32>
    %cst_130 = arith.constant dense<0.000000e+00> : vector<2xf32>
    %187 = vector.multi_reduction <add>, %186, %cst_130 [1] : vector<2x5xf32> to vector<2xf32>
    %188 = vector.shape_cast %187 : vector<2xf32> to vector<2x1xf32>
    %cst_131 = arith.constant -5.000000e-01 : f32
    %189 = vector.broadcast %cst_131 : f32 to vector<2x1xf32>
    %190 = arith.mulf %189, %188 : vector<2x1xf32>
    %cst_132 = arith.constant 4.59469271 : f32
    %191 = vector.broadcast %cst_132 : f32 to vector<2x1xf32>
    %192 = arith.subf %190, %191 : vector<2x1xf32>
    %193 = arith.addf %192, %185 : vector<2x1xf32>
    %c0_133 = arith.constant 0 : index
    %c0_134 = arith.constant 0 : index
    %194 = vector.load %arg7[%c0_133, %c0_134] : memref<2x1xf32, #tpu.memory_space<vmem>>, vector<2x1xf32>
    tpu.vector_store %arg7[%c0_133, %c0_134], %193 {strides = array<i32>} : memref<2x1xf32, #tpu.memory_space<vmem>>, vector<2x1xf32>,
    return
  }
}

</mosaic_0001>

<llo_original>
// kernel: nf_jumptime_forward.1
$region0: #{nf_jumptime_forward.1}
  #allocation0 [shape = 'u32[]', space=smem, size = 0x4, offset = 0x4, fixed_abs, tag = 'smem constant byte address 0x4 - core index']
  #allocation1 [shape = 'u32[144,128]{1,0:T(1,128)}', space=vmem, size = 0x12000, scoped, tag = 'internal scratch']
  %s0 = inlined_call_operand.vmem [shape: f32[2,5], index: 0, kind: input, shape index: {}]
  %s1 = inlined_call_operand.vmem [shape: f32[2,5], index: 1, kind: input, shape index: {}]
  %s2 = inlined_call_operand.vmem [shape: f32[4,5,64], index: 2, kind: input, shape index: {}]
  %s3 = inlined_call_operand.vmem [shape: f32[8,64,64], index: 3, kind: input, shape index: {}]
  %s4 = inlined_call_operand.vmem [shape: f32[6,64,5], index: 4, kind: input, shape index: {}]
  %s5 = inlined_call_operand.hbm [shape: f32[9,1,64], index: 5, kind: input, shape index: {}]
  %s6 = inlined_call_operand.vmem [shape: f32[6,1,5], index: 6, kind: input, shape index: {}]
  %s7 = inlined_call_operand.vmem [shape: f32[2,1], index: 7, kind: output, shape index: {}]
  %s8 = sld [smem:[#allocation0]]
  $region42: #{nf_jumptime_forward.1} parent=0
    _
  %s10 = ssub.s32 1, %s8
  %s11 = scalar_select 0, %s10, %s8
  $region1: #{nf_jumptime_forward.1} parent=0
    #allocation2 [shape = 'u8[4608]{0}', space=vmem, size = 0x1400, scoped, tag = 'input window, operand 5, single buffered']
    #allocation3 [shape = 's32[1]{0}', space=sflag, size = 0x4, scoped, tag = 'scoped memory for nf_jumptime_forward.1']
    %12 = vsyncpa [#allocation3], 0
    // Predicated region
    $region2: #{nf_jumptime_forward.1} parent=1 // pred_check
      _
    $region3: #{nf_jumptime_forward.1} parent=1 // pred_check_branch
      %14 = sbr.rel (0) target = $region5
    $region4: #{nf_jumptime_forward.1} parent=1 // pred_region
      _
    $region5: #{nf_jumptime_forward.1} parent=1 // pred_fallthru
      _
    // Predicated region
    $region6: #{nf_jumptime_forward.1} parent=1 // pred_check
      _
    $region7: #{nf_jumptime_forward.1} parent=1 // pred_check_branch
      %16 = sbr.rel (0) target = $region9
    $region8: #{nf_jumptime_forward.1} parent=1 // pred_region
      _
    $region9: #{nf_jumptime_forward.1} parent=1 // pred_fallthru
      _
    // Predicated region
    $region10: #{nf_jumptime_forward.1} parent=1 // pred_check
      _
    $region11: #{nf_jumptime_forward.1} parent=1 // pred_check_branch
      %18 = sbr.rel (0) target = $region13
    $region12: #{nf_jumptime_forward.1} parent=1 // pred_region
      _
    $region13: #{nf_jumptime_forward.1} parent=1 // pred_fallthru
      _
    // Predicated region
    $region14: #{nf_jumptime_forward.1} parent=1 // pred_check
      _
    $region15: #{nf_jumptime_forward.1} parent=1 // pred_check_branch
      %20 = sbr.rel (0) target = $region17
    $region16: #{nf_jumptime_forward.1} parent=1 // pred_region
      _
    $region17: #{nf_jumptime_forward.1} parent=1 // pred_fallthru
      _
    // Predicated region
    $region18: #{nf_jumptime_forward.1} parent=1 // pred_check
      _
    $region19: #{nf_jumptime_forward.1} parent=1 // pred_check_branch
      %22 = sbr.rel (0) target = $region21
    $region20: #{nf_jumptime_forward.1} parent=1 // pred_region
      _
    $region21: #{nf_jumptime_forward.1} parent=1 // pred_fallthru
      _
    // Predicated region
    $region22: #{nf_jumptime_forward.1} parent=1 // pred_check
      _
    $region23: #{nf_jumptime_forward.1} parent=1 // pred_check_branch
      %24 = sbr.rel (0) target = $region25
    $region24: #{nf_jumptime_forward.1} parent=1 // pred_region
      %s26 = ssub.s32 144, 144
      %27 = vsyncadd [#allocation3], %s26
      %s28 = sshll.u32 [#allocation2], 4
      %s29 = int_to_ptr.vmem [resolvable:$true] %s28
      %34 = dma.hbm_to_vmem [thread:$0]  %s5, 144, %s29, [#allocation3], 16, 16, 1
    $region25: #{nf_jumptime_forward.1} parent=1 // pred_fallthru
      _
    // Predicated region
    $region26: #{nf_jumptime_forward.1} parent=1 // pred_check
      _
    $region27: #{nf_jumptime_forward.1} parent=1 // pred_check_branch
      %36 = sbr.rel (0) target = $region29
    $region28: #{nf_jumptime_forward.1} parent=1 // pred_region
      _
    $region29: #{nf_jumptime_forward.1} parent=1 // pred_fallthru
      _
    // Predicated region
    $region30: #{nf_jumptime_forward.1} parent=1 // pred_check
      _
    $region31: #{nf_jumptime_forward.1} parent=1 // pred_check_branch
      %38 = sbr.rel (0) target = $region33
    $region32: #{nf_jumptime_forward.1} parent=1 // pred_region
      %39 = dma.done [#allocation3], 144
    $region33: #{nf_jumptime_forward.1} parent=1 // pred_fallthru
      _
    %v40 = vld [vmem:[%s0] sm:$0x3]
    %v41 = vld [vmem:[%s2] sm:$0x1f]
    %v42 = vld [vmem:[#allocation2] sm:$0x1]
    %v44 = vlaneseq
    %v45 = vshrl.u32 %v44, 7
    %v46 = vsub.s32 0, %v45
    %v47 = vrot.slane %v42, %v46
    %vm49 = vcmask 39936
    %v51 = vsel %vm49, %v40, 0
    %vm53 = vcmask 1044480
    %v55 = vsel %vm53, %v41, 0
    %57 = vmatprep.subr.mxu0 0.0
    %58 = vmatpush1.msra.mxu0 0.0
    %59 = vmatprep.subr.mxu0 0.0
    %60 = vmatpush1.msra.mxu0 0.0
    %61 = vmatprep.subr.mxu0 0.0
    %62 = vmatpush1.msra.mxu0 0.0
    %63 = vmatprep.subr.mxu0 0.0
    %64 = vmatpush1.msra.mxu0 0.0
    %65 = vmatprep.subr.mxu0 0.0
    %66 = vmatpush1.msra.mxu0 0.0
    %67 = vmatprep.subr.mxu0 0.0
    %68 = vmatpush1.msra.mxu0 0.0
    %69 = vmatprep.subr.mxu0 0.0
    %70 = vmatpush1.msra.mxu0 0.0
    %71 = vmatprep.subr.mxu0 0.0
    %72 = vmatpush1.msra.mxu0 0.0
    %73 = vmatprep.subr.mxu0 0.0
    %74 = vmatpush1.msra.mxu0 0.0
    %75 = vmatprep.subr.mxu0 0.0
    %76 = vmatpush1.msra.mxu0 0.0
    %77 = vmatprep.subr.mxu0 0.0
    %78 = vmatpush1.msra.mxu0 0.0
    %79 = vmatprep.subr.mxu0 0.0
    %80 = vmatpush1.msra.mxu0 0.0
    %81 = vmatprep.subr.mxu0 0.0
    %82 = vmatpush1.msra.mxu0 0.0
    %83 = vmatprep.subr.mxu0 0.0
    %84 = vmatpush1.msra.mxu0 0.0
    %85 = vmatprep.subr.mxu0 0.0
    %86 = vmatpush1.msra.mxu0 0.0
    %87 = vmatprep.subr.mxu0 0.0
    %88 = vmatpush1.msra.mxu0 %v55
    %89 = vmatprep.subr.mxu0 0.0
    %90 = vmatpush2.msra.mxu0 0.0
    %91 = vmatprep.subr.mxu0 0.0
    %92 = vmatpush2.msra.mxu0 0.0
    %93 = vmatprep.subr.mxu0 0.0
    %94 = vmatpush2.msra.mxu0 0.0
    %95 = vmatprep.subr.mxu0 0.0
    %96 = vmatpush2.msra.mxu0 0.0
    %97 = vmatprep.subr.mxu0 0.0
    %98 = vmatpush2.msra.mxu0 0.0
    %99 = vmatprep.subr.mxu0 0.0
    %100 = vmatpush2.msra.mxu0 0.0
    %101 = vmatprep.subr.mxu0 0.0
    %102 = vmatpush2.msra.mxu0 0.0
    %103 = vmatprep.subr.mxu0 0.0
    %104 = vmatpush2.msra.mxu0 0.0
    %105 = vmatprep.subr.mxu0 0.0
    %106 = vmatpush2.msra.mxu0 0.0
    %107 = vmatprep.subr.mxu0 0.0
    %108 = vmatpush2.msra.mxu0 0.0
    %109 = vmatprep.subr.mxu0 0.0
    %110 = vmatpush2.msra.mxu0 0.0
    %111 = vmatprep.subr.mxu0 0.0
    %112 = vmatpush2.msra.mxu0 0.0
    %113 = vmatprep.subr.mxu0 0.0
    %114 = vmatpush2.msra.mxu0 0.0
    %115 = vmatprep.subr.mxu0 0.0
    %116 = vmatpush2.msra.mxu0 0.0
    %117 = vmatprep.subr.mxu0 0.0
    %118 = vmatpush2.msra.mxu0 0.0
    %119 = vmatprep.subr.mxu0 0.0
    %120 = vmatpush2.msra.mxu0 0.0
    %121 = vmatprep.mubr.f32.mxu0 0.0
    %122 = vmatmul.mubr.f32.gmra.mxu0 %v51
    %v123 = vpop.f32.mrf.mxu0
    %v124 = vadd.f32 %v47, %v123
    %v125 = vpop.f32.mrf.mxu0
    %126 = vdwg.mxu0
    %v127 = vxor.u32 %v124, 2147483648
    %v128 = vmul.f32 %v127, 1.442695
    %v129 = vpow.pop %v128
    %v130 = vadd.f32 %v129, 1.0
    %v131 = vrcp.pop %v130
    %v132 = vmul.f32 1.0, %v131
    %v133 = vmul.f32 %v124, %v132
    %v134 = vld [vmem:[%s3] sm:$0xff]
    %v135 = vld [vmem:[%s3 + $0x8] sm:$0xff]
    %v136 = vld [vmem:[%s3 + $0x10] sm:$0xff]
    %v137 = vld [vmem:[%s3 + $0x18] sm:$0xff]
    %v138 = vld [vmem:[%s3 + $0x20] sm:$0xff]
    %v139 = vld [vmem:[%s3 + $0x28] sm:$0xff]
    %v140 = vld [vmem:[%s3 + $0x30] sm:$0xff]
    %v141 = vld [vmem:[%s3 + $0x38] sm:$0xff]
    %s142 = scalar_lea.vmem [#allocation2], 1
    %v143 = vld [vmem:[%s142] sm:$0x1]
    %v145 = vlaneseq
    %v146 = vshrl.u32 %v145, 7
    %v147 = vsub.s32 0, %v146
    %v148 = vrot.slane %v143, %v147
    %vm150 = vcmask 523264
    %v152 = vsel %vm150, %v133, 0
    %154 = vmatprep.subr.mxu0 0.0
    %155 = vmatpush1.msra.mxu0 0.0
    %156 = vmatprep.subr.mxu0 0.0
    %157 = vmatpush1.msra.mxu0 0.0
    %158 = vmatprep.subr.mxu0 0.0
    %159 = vmatpush1.msra.mxu0 0.0
    %160 = vmatprep.subr.mxu0 0.0
    %161 = vmatpush1.msra.mxu0 0.0
    %162 = vmatprep.subr.mxu0 0.0
    %163 = vmatpush1.msra.mxu0 0.0
    %164 = vmatprep.subr.mxu0 0.0
    %165 = vmatpush1.msra.mxu0 0.0
    %166 = vmatprep.subr.mxu0 0.0
    %167 = vmatpush1.msra.mxu0 0.0
    %168 = vmatprep.subr.mxu0 0.0
    %169 = vmatpush1.msra.mxu0 0.0
    %170 = vmatprep.subr.mxu0 0.0
    %171 = vmatpush1.msra.mxu0 %v141
    %172 = vmatprep.subr.mxu0 0.0
    %173 = vmatpush1.msra.mxu0 %v140
    %174 = vmatprep.subr.mxu0 0.0
    %175 = vmatpush1.msra.mxu0 %v139
    %176 = vmatprep.subr.mxu0 0.0
    %177 = vmatpush1.msra.mxu0 %v138
    %178 = vmatprep.subr.mxu0 0.0
    %179 = vmatpush1.msra.mxu0 %v137
    %180 = vmatprep.subr.mxu0 0.0
    %181 = vmatpush1.msra.mxu0 %v136
    %182 = vmatprep.subr.mxu0 0.0
    %183 = vmatpush1.msra.mxu0 %v135
    %184 = vmatprep.subr.mxu0 0.0
    %185 = vmatpush1.msra.mxu0 %v134
    %186 = vmatprep.subr.mxu0 0.0
    %187 = vmatpush2.msra.mxu0 0.0
    %188 = vmatprep.subr.mxu0 0.0
    %189 = vmatpush2.msra.mxu0 0.0
    %190 = vmatprep.subr.mxu0 0.0
    %191 = vmatpush2.msra.mxu0 0.0
    %192 = vmatprep.subr.mxu0 0.0
    %193 = vmatpush2.msra.mxu0 0.0
    %194 = vmatprep.subr.mxu0 0.0
    %195 = vmatpush2.msra.mxu0 0.0
    %196 = vmatprep.subr.mxu0 0.0
    %197 = vmatpush2.msra.mxu0 0.0
    %198 = vmatprep.subr.mxu0 0.0
    %199 = vmatpush2.msra.mxu0 0.0
    %200 = vmatprep.subr.mxu0 0.0
    %201 = vmatpush2.msra.mxu0 0.0
    %202 = vmatprep.subr.mxu0 0.0
    %203 = vmatpush2.msra.mxu0 0.0
    %204 = vmatprep.subr.mxu0 0.0
    %205 = vmatpush2.msra.mxu0 0.0
    %206 = vmatprep.subr.mxu0 0.0
    %207 = vmatpush2.msra.mxu0 0.0
    %208 = vmatprep.subr.mxu0 0.0
    %209 = vmatpush2.msra.mxu0 0.0
    %210 = vmatprep.subr.mxu0 0.0
    %211 = vmatpush2.msra.mxu0 0.0
    %212 = vmatprep.subr.mxu0 0.0
    %213 = vmatpush2.msra.mxu0 0.0
    %214 = vmatprep.subr.mxu0 0.0
    %215 = vmatpush2.msra.mxu0 0.0
    %216 = vmatprep.subr.mxu0 0.0
    %217 = vmatpush2.msra.mxu0 0.0
    %218 = vmatprep.mubr.f32.mxu0 0.0
    %219 = vmatmul.mubr.f32.gmra.mxu0 %v152
    %v220 = vpop.f32.mrf.mxu0
    %v221 = vadd.f32 %v148, %v220
    %v222 = vpop.f32.mrf.mxu0
    %223 = vdwg.mxu0
    %v224 = vxor.u32 %v221, 2147483648
    %v225 = vmul.f32 %v224, 1.442695
    %v226 = vpow.pop %v225
    %v227 = vadd.f32 %v226, 1.0
    %v228 = vrcp.pop %v227
    %v229 = vmul.f32 1.0, %v228
    %v230 = vmul.f32 %v221, %v229
    %s231 = scalar_lea.vmem %s3, 64
    %v232 = vld [vmem:[%s231] sm:$0xff]
    %v233 = vld [vmem:[%s231 + $0x8] sm:$0xff]
    %v234 = vld [vmem:[%s231 + $0x10] sm:$0xff]
    %v235 = vld [vmem:[%s231 + $0x18] sm:$0xff]
    %v236 = vld [vmem:[%s231 + $0x20] sm:$0xff]
    %v237 = vld [vmem:[%s231 + $0x28] sm:$0xff]
    %v238 = vld [vmem:[%s231 + $0x30] sm:$0xff]
    %v239 = vld [vmem:[%s231 + $0x38] sm:$0xff]
    %s240 = scalar_lea.vmem [#allocation2], 2
    %v241 = vld [vmem:[%s240] sm:$0x1]
    %v243 = vlaneseq
    %v244 = vshrl.u32 %v243, 7
    %v245 = vsub.s32 0, %v244
    %v246 = vrot.slane %v241, %v245
    %v249 = vsel %vm150, %v230, 0
    %251 = vmatprep.subr.mxu0 0.0
    %252 = vmatpush1.msra.mxu0 0.0
    %253 = vmatprep.subr.mxu0 0.0
    %254 = vmatpush1.msra.mxu0 0.0
    %255 = vmatprep.subr.mxu0 0.0
    %256 = vmatpush1.msra.mxu0 0.0
    %257 = vmatprep.subr.mxu0 0.0
    %258 = vmatpush1.msra.mxu0 0.0
    %259 = vmatprep.subr.mxu0 0.0
    %260 = vmatpush1.msra.mxu0 0.0
    %261 = vmatprep.subr.mxu0 0.0
    %262 = vmatpush1.msra.mxu0 0.0
    %263 = vmatprep.subr.mxu0 0.0
    %264 = vmatpush1.msra.mxu0 0.0
    %265 = vmatprep.subr.mxu0 0.0
    %266 = vmatpush1.msra.mxu0 0.0
    %267 = vmatprep.subr.mxu0 0.0
    %268 = vmatpush1.msra.mxu0 %v239
    %269 = vmatprep.subr.mxu0 0.0
    %270 = vmatpush1.msra.mxu0 %v238
    %271 = vmatprep.subr.mxu0 0.0
    %272 = vmatpush1.msra.mxu0 %v237
    %273 = vmatprep.subr.mxu0 0.0
    %274 = vmatpush1.msra.mxu0 %v236
    %275 = vmatprep.subr.mxu0 0.0
    %276 = vmatpush1.msra.mxu0 %v235
    %277 = vmatprep.subr.mxu0 0.0
    %278 = vmatpush1.msra.mxu0 %v234
    %279 = vmatprep.subr.mxu0 0.0
    %280 = vmatpush1.msra.mxu0 %v233
    %281 = vmatprep.subr.mxu0 0.0
    %282 = vmatpush1.msra.mxu0 %v232
    %283 = vmatprep.subr.mxu0 0.0
    %284 = vmatpush2.msra.mxu0 0.0
    %285 = vmatprep.subr.mxu0 0.0
    %286 = vmatpush2.msra.mxu0 0.0
    %287 = vmatprep.subr.mxu0 0.0
    %288 = vmatpush2.msra.mxu0 0.0
    %289 = vmatprep.subr.mxu0 0.0
    %290 = vmatpush2.msra.mxu0 0.0
    %291 = vmatprep.subr.mxu0 0.0
    %292 = vmatpush2.msra.mxu0 0.0
    %293 = vmatprep.subr.mxu0 0.0
    %294 = vmatpush2.msra.mxu0 0.0
    %295 = vmatprep.subr.mxu0 0.0
    %296 = vmatpush2.msra.mxu0 0.0
    %297 = vmatprep.subr.mxu0 0.0
    %298 = vmatpush2.msra.mxu0 0.0
    %299 = vmatprep.subr.mxu0 0.0
    %300 = vmatpush2.msra.mxu0 0.0
    %301 = vmatprep.subr.mxu0 0.0
    %302 = vmatpush2.msra.mxu0 0.0
    %303 = vmatprep.subr.mxu0 0.0
    %304 = vmatpush2.msra.mxu0 0.0
    %305 = vmatprep.subr.mxu0 0.0
    %306 = vmatpush2.msra.mxu0 0.0
    %307 = vmatprep.subr.mxu0 0.0
    %308 = vmatpush2.msra.mxu0 0.0
    %309 = vmatprep.subr.mxu0 0.0
    %310 = vmatpush2.msra.mxu0 0.0
    %311 = vmatprep.subr.mxu0 0.0
    %312 = vmatpush2.msra.mxu0 0.0
    %313 = vmatprep.subr.mxu0 0.0
    %314 = vmatpush2.msra.mxu0 0.0
    %315 = vmatprep.mubr.f32.mxu0 0.0
    %316 = vmatmul.mubr.f32.gmra.mxu0 %v249
    %v317 = vpop.f32.mrf.mxu0
    %v318 = vadd.f32 %v246, %v317
    %v319 = vpop.f32.mrf.mxu0
    %320 = vdwg.mxu0
    %v321 = vxor.u32 %v318, 2147483648
    %v322 = vmul.f32 %v321, 1.442695
    %v323 = vpow.pop %v322
    %v324 = vadd.f32 %v323, 1.0
    %v325 = vrcp.pop %v324
    %v326 = vmul.f32 1.0, %v325
    %v327 = vmul.f32 %v318, %v326
    %v328 = vld [vmem:[%s1] sm:$0x3]
    %s329 = scalar_lea.vmem %s2, 8
    %v330 = vld [vmem:[%s329] sm:$0x1f]
    %s331 = scalar_lea.vmem %s3, 128
    %v332 = vld [vmem:[%s331] sm:$0xff]
    %v333 = vld [vmem:[%s331 + $0x8] sm:$0xff]
    %v334 = vld [vmem:[%s331 + $0x10] sm:$0xff]
    %v335 = vld [vmem:[%s331 + $0x18] sm:$0xff]
    %v336 = vld [vmem:[%s331 + $0x20] sm:$0xff]
    %v337 = vld [vmem:[%s331 + $0x28] sm:$0xff]
    %v338 = vld [vmem:[%s331 + $0x30] sm:$0xff]
    %v339 = vld [vmem:[%s331 + $0x38] sm:$0xff]
    %v341 = vsel %vm150, %v327, 0
    %343 = vmatprep.subr.mxu0 0.0
    %344 = vmatpush1.msra.mxu0 0.0
    %345 = vmatprep.subr.mxu0 0.0
    %346 = vmatpush1.msra.mxu0 0.0
    %347 = vmatprep.subr.mxu0 0.0
    %348 = vmatpush1.msra.mxu0 0.0
    %349 = vmatprep.subr.mxu0 0.0
    %350 = vmatpush1.msra.mxu0 0.0
    %351 = vmatprep.subr.mxu0 0.0
    %352 = vmatpush1.msra.mxu0 0.0
    %353 = vmatprep.subr.mxu0 0.0
    %354 = vmatpush1.msra.mxu0 0.0
    %355 = vmatprep.subr.mxu0 0.0
    %356 = vmatpush1.msra.mxu0 0.0
    %357 = vmatprep.subr.mxu0 0.0
    %358 = vmatpush1.msra.mxu0 0.0
    %359 = vmatprep.subr.mxu0 0.0
    %360 = vmatpush1.msra.mxu0 %v339
    %361 = vmatprep.subr.mxu0 0.0
    %362 = vmatpush1.msra.mxu0 %v338
    %363 = vmatprep.subr.mxu0 0.0
    %364 = vmatpush1.msra.mxu0 %v337
    %365 = vmatprep.subr.mxu0 0.0
    %366 = vmatpush1.msra.mxu0 %v336
    %367 = vmatprep.subr.mxu0 0.0
    %368 = vmatpush1.msra.mxu0 %v335
    %369 = vmatprep.subr.mxu0 0.0
    %370 = vmatpush1.msra.mxu0 %v334
    %371 = vmatprep.subr.mxu0 0.0
    %372 = vmatpush1.msra.mxu0 %v333
    %373 = vmatprep.subr.mxu0 0.0
    %374 = vmatpush1.msra.mxu0 %v332
    %375 = vmatprep.subr.mxu0 0.0
    %376 = vmatpush2.msra.mxu0 0.0
    %377 = vmatprep.subr.mxu0 0.0
    %378 = vmatpush2.msra.mxu0 0.0
    %379 = vmatprep.subr.mxu0 0.0
    %380 = vmatpush2.msra.mxu0 0.0
    %381 = vmatprep.subr.mxu0 0.0
    %382 = vmatpush2.msra.mxu0 0.0
    %383 = vmatprep.subr.mxu0 0.0
    %384 = vmatpush2.msra.mxu0 0.0
    %385 = vmatprep.subr.mxu0 0.0
    %386 = vmatpush2.msra.mxu0 0.0
    %387 = vmatprep.subr.mxu0 0.0
    %388 = vmatpush2.msra.mxu0 0.0
    %389 = vmatprep.subr.mxu0 0.0
    %390 = vmatpush2.msra.mxu0 0.0
    %391 = vmatprep.subr.mxu0 0.0
    %392 = vmatpush2.msra.mxu0 0.0
    %393 = vmatprep.subr.mxu0 0.0
    %394 = vmatpush2.msra.mxu0 0.0
    %395 = vmatprep.subr.mxu0 0.0
    %396 = vmatpush2.msra.mxu0 0.0
    %397 = vmatprep.subr.mxu0 0.0
    %398 = vmatpush2.msra.mxu0 0.0
    %399 = vmatprep.subr.mxu0 0.0
    %400 = vmatpush2.msra.mxu0 0.0
    %401 = vmatprep.subr.mxu0 0.0
    %402 = vmatpush2.msra.mxu0 0.0
    %403 = vmatprep.subr.mxu0 0.0
    %404 = vmatpush2.msra.mxu0 0.0
    %405 = vmatprep.subr.mxu0 0.0
    %406 = vmatpush2.msra.mxu0 0.0
    %407 = vmatprep.mubr.f32.mxu0 0.0
    %408 = vmatmul.mubr.f32.gmra.mxu0 %v341
    %v409 = vpop.f32.mrf.mxu0
    %v410 = vadd.f32 0.0, %v409
    %v411 = vpop.f32.mrf.mxu0
    %412 = vdwg.mxu0
    %v414 = vsel %vm49, %v328, 0
    %v417 = vsel %vm53, %v330, 0
    %419 = vmatprep.subr.mxu0 0.0
    %420 = vmatpush1.msra.mxu0 0.0
    %421 = vmatprep.subr.mxu0 0.0
    %422 = vmatpush1.msra.mxu0 0.0
    %423 = vmatprep.subr.mxu0 0.0
    %424 = vmatpush1.msra.mxu0 0.0
    %425 = vmatprep.subr.mxu0 0.0
    %426 = vmatpush1.msra.mxu0 0.0
    %427 = vmatprep.subr.mxu0 0.0
    %428 = vmatpush1.msra.mxu0 0.0
    %429 = vmatprep.subr.mxu0 0.0
    %430 = vmatpush1.msra.mxu0 0.0
    %431 = vmatprep.subr.mxu0 0.0
    %432 = vmatpush1.msra.mxu0 0.0
    %433 = vmatprep.subr.mxu0 0.0
    %434 = vmatpush1.msra.mxu0 0.0
    %435 = vmatprep.subr.mxu0 0.0
    %436 = vmatpush1.msra.mxu0 0.0
    %437 = vmatprep.subr.mxu0 0.0
    %438 = vmatpush1.msra.mxu0 0.0
    %439 = vmatprep.subr.mxu0 0.0
    %440 = vmatpush1.msra.mxu0 0.0
    %441 = vmatprep.subr.mxu0 0.0
    %442 = vmatpush1.msra.mxu0 0.0
    %443 = vmatprep.subr.mxu0 0.0
    %444 = vmatpush1.msra.mxu0 0.0
    %445 = vmatprep.subr.mxu0 0.0
    %446 = vmatpush1.msra.mxu0 0.0
    %447 = vmatprep.subr.mxu0 0.0
    %448 = vmatpush1.msra.mxu0 0.0
    %449 = vmatprep.subr.mxu0 0.0
    %450 = vmatpush1.msra.mxu0 %v417
    %451 = vmatprep.subr.mxu0 0.0
    %452 = vmatpush2.msra.mxu0 0.0
    %453 = vmatprep.subr.mxu0 0.0
    %454 = vmatpush2.msra.mxu0 0.0
    %455 = vmatprep.subr.mxu0 0.0
    %456 = vmatpush2.msra.mxu0 0.0
    %457 = vmatprep.subr.mxu0 0.0
    %458 = vmatpush2.msra.mxu0 0.0
    %459 = vmatprep.subr.mxu0 0.0
    %460 = vmatpush2.msra.mxu0 0.0
    %461 = vmatprep.subr.mxu0 0.0
    %462 = vmatpush2.msra.mxu0 0.0
    %463 = vmatprep.subr.mxu0 0.0
    %464 = vmatpush2.msra.mxu0 0.0
    %465 = vmatprep.subr.mxu0 0.0
    %466 = vmatpush2.msra.mxu0 0.0
    %467 = vmatprep.subr.mxu0 0.0
    %468 = vmatpush2.msra.mxu0 0.0
    %469 = vmatprep.subr.mxu0 0.0
    %470 = vmatpush2.msra.mxu0 0.0
    %471 = vmatprep.subr.mxu0 0.0
    %472 = vmatpush2.msra.mxu0 0.0
    %473 = vmatprep.subr.mxu0 0.0
    %474 = vmatpush2.msra.mxu0 0.0
    %475 = vmatprep.subr.mxu0 0.0
    %476 = vmatpush2.msra.mxu0 0.0
    %477 = vmatprep.subr.mxu0 0.0
    %478 = vmatpush2.msra.mxu0 0.0
    %479 = vmatprep.subr.mxu0 0.0
    %480 = vmatpush2.msra.mxu0 0.0
    %481 = vmatprep.subr.mxu0 0.0
    %482 = vmatpush2.msra.mxu0 0.0
    %483 = vmatprep.mubr.f32.mxu0 0.0
    %484 = vmatmul.mubr.f32.gmra.mxu0 %v414
    %v485 = vpop.f32.mrf.mxu0
    %v486 = vadd.f32 %v410, %v485
    %v487 = vpop.f32.mrf.mxu0
    %488 = vdwg.mxu0
    %s489 = scalar_lea.vmem [#allocation2], 3
    %v490 = vld [vmem:[%s489] sm:$0x1]
    %v492 = vlaneseq
    %v493 = vshrl.u32 %v492, 7
    %v494 = vsub.s32 0, %v493
    %v495 = vrot.slane %v490, %v494
    %v497 = vadd.f32 %v486, %v495
    %v498 = vmax.f32 %v497, 0.0
    %s499 = scalar_lea.vmem %s3, 192
    %v500 = vld [vmem:[%s499] sm:$0xff]
    %v501 = vld [vmem:[%s499 + $0x8] sm:$0xff]
    %v502 = vld [vmem:[%s499 + $0x10] sm:$0xff]
    %v503 = vld [vmem:[%s499 + $0x18] sm:$0xff]
    %v504 = vld [vmem:[%s499 + $0x20] sm:$0xff]
    %v505 = vld [vmem:[%s499 + $0x28] sm:$0xff]
    %v506 = vld [vmem:[%s499 + $0x30] sm:$0xff]
    %v507 = vld [vmem:[%s499 + $0x38] sm:$0xff]
    %s508 = scalar_lea.vmem [#allocation2], 4
    %v509 = vld [vmem:[%s508] sm:$0x1]
    %v511 = vlaneseq
    %v512 = vshrl.u32 %v511, 7
    %v513 = vsub.s32 0, %v512
    %v514 = vrot.slane %v509, %v513
    %v517 = vsel %vm150, %v498, 0
    %519 = vmatprep.subr.mxu0 0.0
    %520 = vmatpush1.msra.mxu0 0.0
    %521 = vmatprep.subr.mxu0 0.0
    %522 = vmatpush1.msra.mxu0 0.0
    %523 = vmatprep.subr.mxu0 0.0
    %524 = vmatpush1.msra.mxu0 0.0
    %525 = vmatprep.subr.mxu0 0.0
    %526 = vmatpush1.msra.mxu0 0.0
    %527 = vmatprep.subr.mxu0 0.0
    %528 = vmatpush1.msra.mxu0 0.0
    %529 = vmatprep.subr.mxu0 0.0
    %530 = vmatpush1.msra.mxu0 0.0
    %531 = vmatprep.subr.mxu0 0.0
    %532 = vmatpush1.msra.mxu0 0.0
    %533 = vmatprep.subr.mxu0 0.0
    %534 = vmatpush1.msra.mxu0 0.0
    %535 = vmatprep.subr.mxu0 0.0
    %536 = vmatpush1.msra.mxu0 %v507
    %537 = vmatprep.subr.mxu0 0.0
    %538 = vmatpush1.msra.mxu0 %v506
    %539 = vmatprep.subr.mxu0 0.0
    %540 = vmatpush1.msra.mxu0 %v505
    %541 = vmatprep.subr.mxu0 0.0
    %542 = vmatpush1.msra.mxu0 %v504
    %543 = vmatprep.subr.mxu0 0.0
    %544 = vmatpush1.msra.mxu0 %v503
    %545 = vmatprep.subr.mxu0 0.0
    %546 = vmatpush1.msra.mxu0 %v502
    %547 = vmatprep.subr.mxu0 0.0
    %548 = vmatpush1.msra.mxu0 %v501
    %549 = vmatprep.subr.mxu0 0.0
    %550 = vmatpush1.msra.mxu0 %v500
    %551 = vmatprep.subr.mxu0 0.0
    %552 = vmatpush2.msra.mxu0 0.0
    %553 = vmatprep.subr.mxu0 0.0
    %554 = vmatpush2.msra.mxu0 0.0
    %555 = vmatprep.subr.mxu0 0.0
    %556 = vmatpush2.msra.mxu0 0.0
    %557 = vmatprep.subr.mxu0 0.0
    %558 = vmatpush2.msra.mxu0 0.0
    %559 = vmatprep.subr.mxu0 0.0
    %560 = vmatpush2.msra.mxu0 0.0
    %561 = vmatprep.subr.mxu0 0.0
    %562 = vmatpush2.msra.mxu0 0.0
    %563 = vmatprep.subr.mxu0 0.0
    %564 = vmatpush2.msra.mxu0 0.0
    %565 = vmatprep.subr.mxu0 0.0
    %566 = vmatpush2.msra.mxu0 0.0
    %567 = vmatprep.subr.mxu0 0.0
    %568 = vmatpush2.msra.mxu0 0.0
    %569 = vmatprep.subr.mxu0 0.0
    %570 = vmatpush2.msra.mxu0 0.0
    %571 = vmatprep.subr.mxu0 0.0
    %572 = vmatpush2.msra.mxu0 0.0
    %573 = vmatprep.subr.mxu0 0.0
    %574 = vmatpush2.msra.mxu0 0.0
    %575 = vmatprep.subr.mxu0 0.0
    %576 = vmatpush2.msra.mxu0 0.0
    %577 = vmatprep.subr.mxu0 0.0
    %578 = vmatpush2.msra.mxu0 0.0
    %579 = vmatprep.subr.mxu0 0.0
    %580 = vmatpush2.msra.mxu0 0.0
    %581 = vmatprep.subr.mxu0 0.0
    %582 = vmatpush2.msra.mxu0 0.0
    %583 = vmatprep.mubr.f32.mxu0 0.0
    %584 = vmatmul.mubr.f32.gmra.mxu0 %v517
    %v585 = vpop.f32.mrf.mxu0
    %v586 = vadd.f32 %v514, %v585
    %v587 = vpop.f32.mrf.mxu0
    %588 = vdwg.mxu0
    %v589 = vmax.f32 %v586, 0.0
    %v590 = vld [vmem:[%s4] sm:$0xff]
    %v591 = vld [vmem:[%s4 + $0x8] sm:$0xff]
    %v592 = vld [vmem:[%s4 + $0x10] sm:$0xff]
    %v593 = vld [vmem:[%s4 + $0x18] sm:$0xff]
    %v594 = vld [vmem:[%s4 + $0x20] sm:$0xff]
    %v595 = vld [vmem:[%s4 + $0x28] sm:$0xff]
    %v596 = vld [vmem:[%s4 + $0x30] sm:$0xff]
    %v597 = vld [vmem:[%s4 + $0x38] sm:$0xff]
    %v598 = vld [vmem:[%s6] sm:$0x1]
    %v600 = vlaneseq
    %v601 = vshrl.u32 %v600, 7
    %v602 = vsub.s32 0, %v601
    %v603 = vrot.slane %v598, %v602
    %v606 = vsel %vm150, %v589, 0
    %608 = vmatprep.subr.mxu0 0.0
    %609 = vmatpush1.msra.mxu0 0.0
    %610 = vmatprep.subr.mxu0 0.0
    %611 = vmatpush1.msra.mxu0 0.0
    %612 = vmatprep.subr.mxu0 0.0
    %613 = vmatpush1.msra.mxu0 0.0
    %614 = vmatprep.subr.mxu0 0.0
    %615 = vmatpush1.msra.mxu0 0.0
    %616 = vmatprep.subr.mxu0 0.0
    %617 = vmatpush1.msra.mxu0 0.0
    %618 = vmatprep.subr.mxu0 0.0
    %619 = vmatpush1.msra.mxu0 0.0
    %620 = vmatprep.subr.mxu0 0.0
    %621 = vmatpush1.msra.mxu0 0.0
    %622 = vmatprep.subr.mxu0 0.0
    %623 = vmatpush1.msra.mxu0 0.0
    %624 = vmatprep.subr.mxu0 0.0
    %625 = vmatpush1.msra.mxu0 %v597
    %626 = vmatprep.subr.mxu0 0.0
    %627 = vmatpush1.msra.mxu0 %v596
    %628 = vmatprep.subr.mxu0 0.0
    %629 = vmatpush1.msra.mxu0 %v595
    %630 = vmatprep.subr.mxu0 0.0
    %631 = vmatpush1.msra.mxu0 %v594
    %632 = vmatprep.subr.mxu0 0.0
    %633 = vmatpush1.msra.mxu0 %v593
    %634 = vmatprep.subr.mxu0 0.0
    %635 = vmatpush1.msra.mxu0 %v592
    %636 = vmatprep.subr.mxu0 0.0
    %637 = vmatpush1.msra.mxu0 %v591
    %638 = vmatprep.subr.mxu0 0.0
    %639 = vmatpush1.msra.mxu0 %v590
    %640 = vmatprep.subr.mxu0 0.0
    %641 = vmatpush2.msra.mxu0 0.0
    %642 = vmatprep.subr.mxu0 0.0
    %643 = vmatpush2.msra.mxu0 0.0
    %644 = vmatprep.subr.mxu0 0.0
    %645 = vmatpush2.msra.mxu0 0.0
    %646 = vmatprep.subr.mxu0 0.0
    %647 = vmatpush2.msra.mxu0 0.0
    %648 = vmatprep.subr.mxu0 0.0
    %649 = vmatpush2.msra.mxu0 0.0
    %650 = vmatprep.subr.mxu0 0.0
    %651 = vmatpush2.msra.mxu0 0.0
    %652 = vmatprep.subr.mxu0 0.0
    %653 = vmatpush2.msra.mxu0 0.0
    %654 = vmatprep.subr.mxu0 0.0
    %655 = vmatpush2.msra.mxu0 0.0
    %656 = vmatprep.subr.mxu0 0.0
    %657 = vmatpush2.msra.mxu0 0.0
    %658 = vmatprep.subr.mxu0 0.0
    %659 = vmatpush2.msra.mxu0 0.0
    %660 = vmatprep.subr.mxu0 0.0
    %661 = vmatpush2.msra.mxu0 0.0
    %662 = vmatprep.subr.mxu0 0.0
    %663 = vmatpush2.msra.mxu0 0.0
    %664 = vmatprep.subr.mxu0 0.0
    %665 = vmatpush2.msra.mxu0 0.0
    %666 = vmatprep.subr.mxu0 0.0
    %667 = vmatpush2.msra.mxu0 0.0
    %668 = vmatprep.subr.mxu0 0.0
    %669 = vmatpush2.msra.mxu0 0.0
    %670 = vmatprep.subr.mxu0 0.0
    %671 = vmatpush2.msra.mxu0 0.0
    %672 = vmatprep.mubr.f32.mxu0 0.0
    %673 = vmatmul.mubr.f32.gmra.mxu0 %v606
    %v674 = vpop.f32.mrf.mxu0
    %v675 = vadd.f32 %v603, %v674
    %v676 = vpop.f32.mrf.mxu0
    %677 = vdwg.mxu0
    %s678 = scalar_lea.vmem %s4, 192
    %v679 = vld [vmem:[%s678] sm:$0xff]
    %v680 = vld [vmem:[%s678 + $0x8] sm:$0xff]
    %v681 = vld [vmem:[%s678 + $0x10] sm:$0xff]
    %v682 = vld [vmem:[%s678 + $0x18] sm:$0xff]
    %v683 = vld [vmem:[%s678 + $0x20] sm:$0xff]
    %v684 = vld [vmem:[%s678 + $0x28] sm:$0xff]
    %v685 = vld [vmem:[%s678 + $0x30] sm:$0xff]
    %v686 = vld [vmem:[%s678 + $0x38] sm:$0xff]
    %s687 = scalar_lea.vmem %s6, 3
    %v688 = vld [vmem:[%s687] sm:$0x1]
    %v690 = vlaneseq
    %v691 = vshrl.u32 %v690, 7
    %v692 = vsub.s32 0, %v691
    %v693 = vrot.slane %v688, %v692
    %695 = vmatprep.subr.mxu0 0.0
    %696 = vmatpush1.msra.mxu0 0.0
    %697 = vmatprep.subr.mxu0 0.0
    %698 = vmatpush1.msra.mxu0 0.0
    %699 = vmatprep.subr.mxu0 0.0
    %700 = vmatpush1.msra.mxu0 0.0
    %701 = vmatprep.subr.mxu0 0.0
    %702 = vmatpush1.msra.mxu0 0.0
    %703 = vmatprep.subr.mxu0 0.0
    %704 = vmatpush1.msra.mxu0 0.0
    %705 = vmatprep.subr.mxu0 0.0
    %706 = vmatpush1.msra.mxu0 0.0
    %707 = vmatprep.subr.mxu0 0.0
    %708 = vmatpush1.msra.mxu0 0.0
    %709 = vmatprep.subr.mxu0 0.0
    %710 = vmatpush1.msra.mxu0 0.0
    %711 = vmatprep.subr.mxu0 0.0
    %712 = vmatpush1.msra.mxu0 %v686
    %713 = vmatprep.subr.mxu0 0.0
    %714 = vmatpush1.msra.mxu0 %v685
    %715 = vmatprep.subr.mxu0 0.0
    %716 = vmatpush1.msra.mxu0 %v684
    %717 = vmatprep.subr.mxu0 0.0
    %718 = vmatpush1.msra.mxu0 %v683
    %719 = vmatprep.subr.mxu0 0.0
    %720 = vmatpush1.msra.mxu0 %v682
    %721 = vmatprep.subr.mxu0 0.0
    %722 = vmatpush1.msra.mxu0 %v681
    %723 = vmatprep.subr.mxu0 0.0
    %724 = vmatpush1.msra.mxu0 %v680
    %725 = vmatprep.subr.mxu0 0.0
    %726 = vmatpush1.msra.mxu0 %v679
    %727 = vmatprep.subr.mxu0 0.0
    %728 = vmatpush2.msra.mxu0 0.0
    %729 = vmatprep.subr.mxu0 0.0
    %730 = vmatpush2.msra.mxu0 0.0
    %731 = vmatprep.subr.mxu0 0.0
    %732 = vmatpush2.msra.mxu0 0.0
    %733 = vmatprep.subr.mxu0 0.0
    %734 = vmatpush2.msra.mxu0 0.0
    %735 = vmatprep.subr.mxu0 0.0
    %736 = vmatpush2.msra.mxu0 0.0
    %737 = vmatprep.subr.mxu0 0.0
    %738 = vmatpush2.msra.mxu0 0.0
    %739 = vmatprep.subr.mxu0 0.0
    %740 = vmatpush2.msra.mxu0 0.0
    %741 = vmatprep.subr.mxu0 0.0
    %742 = vmatpush2.msra.mxu0 0.0
    %743 = vmatprep.subr.mxu0 0.0
    %744 = vmatpush2.msra.mxu0 0.0
    %745 = vmatprep.subr.mxu0 0.0
    %746 = vmatpush2.msra.mxu0 0.0
    %747 = vmatprep.subr.mxu0 0.0
    %748 = vmatpush2.msra.mxu0 0.0
    %749 = vmatprep.subr.mxu0 0.0
    %750 = vmatpush2.msra.mxu0 0.0
    %751 = vmatprep.subr.mxu0 0.0
    %752 = vmatpush2.msra.mxu0 0.0
    %753 = vmatprep.subr.mxu0 0.0
    %754 = vmatpush2.msra.mxu0 0.0
    %755 = vmatprep.subr.mxu0 0.0
    %756 = vmatpush2.msra.mxu0 0.0
    %757 = vmatprep.subr.mxu0 0.0
    %758 = vmatpush2.msra.mxu0 0.0
    %759 = vmatprep.mubr.f32.mxu0 0.0
    %760 = vmatmul.mubr.f32.gmra.mxu0 %v606
    %v761 = vpop.f32.mrf.mxu0
    %v762 = vadd.f32 %v693, %v761
    %v763 = vpop.f32.mrf.mxu0
    %764 = vdwg.mxu0
    %v765 = vrcp.pop -6.9077554
    %v766 = vmul.f32 %v762, %v765
    %v767 = vand.u32 2147483647, %v766
    %v768 = vadd.f32 %v767, 1.0
    %v769 = vrcp.pop %v768
    %v770 = vmul.f32 %v762, %v769
    %v771 = vmul.f32 %v770, 1.442695
    %v772 = vpow.pop %v771
    %v773 = vmul.f32 %v328, %v772
    %v774 = vadd.f32 %v773, %v675
    %vm775 = vcmask 33792
    %v776 = vsel %vm775, %v770, 0.0
    %777 = vadd.xlane.f32.xlu0 %v776
    %v778 = vpop.xlane.xlu0 %777
    %v779 = vadd.f32 %v778, 0.0
    %s780 = scalar_lea.vmem %s2, 16
    %v781 = vld [vmem:[%s780] sm:$0x1f]
    %s782 = scalar_lea.vmem %s3, 256
    %v783 = vld [vmem:[%s782] sm:$0xff]
    %v784 = vld [vmem:[%s782 + $0x8] sm:$0xff]
    %v785 = vld [vmem:[%s782 + $0x10] sm:$0xff]
    %v786 = vld [vmem:[%s782 + $0x18] sm:$0xff]
    %v787 = vld [vmem:[%s782 + $0x20] sm:$0xff]
    %v788 = vld [vmem:[%s782 + $0x28] sm:$0xff]
    %v789 = vld [vmem:[%s782 + $0x30] sm:$0xff]
    %v790 = vld [vmem:[%s782 + $0x38] sm:$0xff]
    %791 = vmatprep.subr.mxu0 0.0
    %792 = vmatpush1.msra.mxu0 0.0
    %793 = vmatprep.subr.mxu0 0.0
    %794 = vmatpush1.msra.mxu0 0.0
    %795 = vmatprep.subr.mxu0 0.0
    %796 = vmatpush1.msra.mxu0 0.0
    %797 = vmatprep.subr.mxu0 0.0
    %798 = vmatpush1.msra.mxu0 0.0
    %799 = vmatprep.subr.mxu0 0.0
    %800 = vmatpush1.msra.mxu0 0.0
    %801 = vmatprep.subr.mxu0 0.0
    %802 = vmatpush1.msra.mxu0 0.0
    %803 = vmatprep.subr.mxu0 0.0
    %804 = vmatpush1.msra.mxu0 0.0
    %805 = vmatprep.subr.mxu0 0.0
    %806 = vmatpush1.msra.mxu0 0.0
    %807 = vmatprep.subr.mxu0 0.0
    %808 = vmatpush1.msra.mxu0 %v790
    %809 = vmatprep.subr.mxu0 0.0
    %810 = vmatpush1.msra.mxu0 %v789
    %811 = vmatprep.subr.mxu0 0.0
    %812 = vmatpush1.msra.mxu0 %v788
    %813 = vmatprep.subr.mxu0 0.0
    %814 = vmatpush1.msra.mxu0 %v787
    %815 = vmatprep.subr.mxu0 0.0
    %816 = vmatpush1.msra.mxu0 %v786
    %817 = vmatprep.subr.mxu0 0.0
    %818 = vmatpush1.msra.mxu0 %v785
    %819 = vmatprep.subr.mxu0 0.0
    %820 = vmatpush1.msra.mxu0 %v784
    %821 = vmatprep.subr.mxu0 0.0
    %822 = vmatpush1.msra.mxu0 %v783
    %823 = vmatprep.subr.mxu0 0.0
    %824 = vmatpush2.msra.mxu0 0.0
    %825 = vmatprep.subr.mxu0 0.0
    %826 = vmatpush2.msra.mxu0 0.0
    %827 = vmatprep.subr.mxu0 0.0
    %828 = vmatpush2.msra.mxu0 0.0
    %829 = vmatprep.subr.mxu0 0.0
    %830 = vmatpush2.msra.mxu0 0.0
    %831 = vmatprep.subr.mxu0 0.0
    %832 = vmatpush2.msra.mxu0 0.0
    %833 = vmatprep.subr.mxu0 0.0
    %834 = vmatpush2.msra.mxu0 0.0
    %835 = vmatprep.subr.mxu0 0.0
    %836 = vmatpush2.msra.mxu0 0.0
    %837 = vmatprep.subr.mxu0 0.0
    %838 = vmatpush2.msra.mxu0 0.0
    %839 = vmatprep.subr.mxu0 0.0
    %840 = vmatpush2.msra.mxu0 0.0
    %841 = vmatprep.subr.mxu0 0.0
    %842 = vmatpush2.msra.mxu0 0.0
    %843 = vmatprep.subr.mxu0 0.0
    %844 = vmatpush2.msra.mxu0 0.0
    %845 = vmatprep.subr.mxu0 0.0
    %846 = vmatpush2.msra.mxu0 0.0
    %847 = vmatprep.subr.mxu0 0.0
    %848 = vmatpush2.msra.mxu0 0.0
    %849 = vmatprep.subr.mxu0 0.0
    %850 = vmatpush2.msra.mxu0 0.0
    %851 = vmatprep.subr.mxu0 0.0
    %852 = vmatpush2.msra.mxu0 0.0
    %853 = vmatprep.subr.mxu0 0.0
    %854 = vmatpush2.msra.mxu0 0.0
    %855 = vmatprep.mubr.f32.mxu0 0.0
    %856 = vmatmul.mubr.f32.gmra.mxu0 %v341
    %v857 = vpop.f32.mrf.mxu0
    %v858 = vadd.f32 0.0, %v857
    %v859 = vpop.f32.mrf.mxu0
    %860 = vdwg.mxu0
    %v862 = vsel %vm49, %v774, 0
    %v865 = vsel %vm53, %v781, 0
    %867 = vmatprep.subr.mxu0 0.0
    %868 = vmatpush1.msra.mxu0 0.0
    %869 = vmatprep.subr.mxu0 0.0
    %870 = vmatpush1.msra.mxu0 0.0
    %871 = vmatprep.subr.mxu0 0.0
    %872 = vmatpush1.msra.mxu0 0.0
    %873 = vmatprep.subr.mxu0 0.0
    %874 = vmatpush1.msra.mxu0 0.0
    %875 = vmatprep.subr.mxu0 0.0
    %876 = vmatpush1.msra.mxu0 0.0
    %877 = vmatprep.subr.mxu0 0.0
    %878 = vmatpush1.msra.mxu0 0.0
    %879 = vmatprep.subr.mxu0 0.0
    %880 = vmatpush1.msra.mxu0 0.0
    %881 = vmatprep.subr.mxu0 0.0
    %882 = vmatpush1.msra.mxu0 0.0
    %883 = vmatprep.subr.mxu0 0.0
    %884 = vmatpush1.msra.mxu0 0.0
    %885 = vmatprep.subr.mxu0 0.0
    %886 = vmatpush1.msra.mxu0 0.0
    %887 = vmatprep.subr.mxu0 0.0
    %888 = vmatpush1.msra.mxu0 0.0
    %889 = vmatprep.subr.mxu0 0.0
    %890 = vmatpush1.msra.mxu0 0.0
    %891 = vmatprep.subr.mxu0 0.0
    %892 = vmatpush1.msra.mxu0 0.0
    %893 = vmatprep.subr.mxu0 0.0
    %894 = vmatpush1.msra.mxu0 0.0
    %895 = vmatprep.subr.mxu0 0.0
    %896 = vmatpush1.msra.mxu0 0.0
    %897 = vmatprep.subr.mxu0 0.0
    %898 = vmatpush1.msra.mxu0 %v865
    %899 = vmatprep.subr.mxu0 0.0
    %900 = vmatpush2.msra.mxu0 0.0
    %901 = vmatprep.subr.mxu0 0.0
    %902 = vmatpush2.msra.mxu0 0.0
    %903 = vmatprep.subr.mxu0 0.0
    %904 = vmatpush2.msra.mxu0 0.0
    %905 = vmatprep.subr.mxu0 0.0
    %906 = vmatpush2.msra.mxu0 0.0
    %907 = vmatprep.subr.mxu0 0.0
    %908 = vmatpush2.msra.mxu0 0.0
    %909 = vmatprep.subr.mxu0 0.0
    %910 = vmatpush2.msra.mxu0 0.0
    %911 = vmatprep.subr.mxu0 0.0
    %912 = vmatpush2.msra.mxu0 0.0
    %913 = vmatprep.subr.mxu0 0.0
    %914 = vmatpush2.msra.mxu0 0.0
    %915 = vmatprep.subr.mxu0 0.0
    %916 = vmatpush2.msra.mxu0 0.0
    %917 = vmatprep.subr.mxu0 0.0
    %918 = vmatpush2.msra.mxu0 0.0
    %919 = vmatprep.subr.mxu0 0.0
    %920 = vmatpush2.msra.mxu0 0.0
    %921 = vmatprep.subr.mxu0 0.0
    %922 = vmatpush2.msra.mxu0 0.0
    %923 = vmatprep.subr.mxu0 0.0
    %924 = vmatpush2.msra.mxu0 0.0
    %925 = vmatprep.subr.mxu0 0.0
    %926 = vmatpush2.msra.mxu0 0.0
    %927 = vmatprep.subr.mxu0 0.0
    %928 = vmatpush2.msra.mxu0 0.0
    %929 = vmatprep.subr.mxu0 0.0
    %930 = vmatpush2.msra.mxu0 0.0
    %931 = vmatprep.mubr.f32.mxu0 0.0
    %932 = vmatmul.mubr.f32.gmra.mxu0 %v862
    %v933 = vpop.f32.mrf.mxu0
    %v934 = vadd.f32 %v858, %v933
    %v935 = vpop.f32.mrf.mxu0
    %936 = vdwg.mxu0
    %s937 = scalar_lea.vmem [#allocation2], 5
    %v938 = vld [vmem:[%s937] sm:$0x1]
    %v940 = vlaneseq
    %v941 = vshrl.u32 %v940, 7
    %v942 = vsub.s32 0, %v941
    %v943 = vrot.slane %v938, %v942
    %v945 = vadd.f32 %v934, %v943
    %v946 = vmax.f32 %v945, 0.0
    %s947 = scalar_lea.vmem %s3, 320
    %v948 = vld [vmem:[%s947] sm:$0xff]
    %v949 = vld [vmem:[%s947 + $0x8] sm:$0xff]
    %v950 = vld [vmem:[%s947 + $0x10] sm:$0xff]
    %v951 = vld [vmem:[%s947 + $0x18] sm:$0xff]
    %v952 = vld [vmem:[%s947 + $0x20] sm:$0xff]
    %v953 = vld [vmem:[%s947 + $0x28] sm:$0xff]
    %v954 = vld [vmem:[%s947 + $0x30] sm:$0xff]
    %v955 = vld [vmem:[%s947 + $0x38] sm:$0xff]
    %s956 = scalar_lea.vmem [#allocation2], 6
    %v957 = vld [vmem:[%s956] sm:$0x1]
    %v959 = vlaneseq
    %v960 = vshrl.u32 %v959, 7
    %v961 = vsub.s32 0, %v960
    %v962 = vrot.slane %v957, %v961
    %v965 = vsel %vm150, %v946, 0
    %967 = vmatprep.subr.mxu0 0.0
    %968 = vmatpush1.msra.mxu0 0.0
    %969 = vmatprep.subr.mxu0 0.0
    %970 = vmatpush1.msra.mxu0 0.0
    %971 = vmatprep.subr.mxu0 0.0
    %972 = vmatpush1.msra.mxu0 0.0
    %973 = vmatprep.subr.mxu0 0.0
    %974 = vmatpush1.msra.mxu0 0.0
    %975 = vmatprep.subr.mxu0 0.0
    %976 = vmatpush1.msra.mxu0 0.0
    %977 = vmatprep.subr.mxu0 0.0
    %978 = vmatpush1.msra.mxu0 0.0
    %979 = vmatprep.subr.mxu0 0.0
    %980 = vmatpush1.msra.mxu0 0.0
    %981 = vmatprep.subr.mxu0 0.0
    %982 = vmatpush1.msra.mxu0 0.0
    %983 = vmatprep.subr.mxu0 0.0
    %984 = vmatpush1.msra.mxu0 %v955
    %985 = vmatprep.subr.mxu0 0.0
    %986 = vmatpush1.msra.mxu0 %v954
    %987 = vmatprep.subr.mxu0 0.0
    %988 = vmatpush1.msra.mxu0 %v953
    %989 = vmatprep.subr.mxu0 0.0
    %990 = vmatpush1.msra.mxu0 %v952
    %991 = vmatprep.subr.mxu0 0.0
    %992 = vmatpush1.msra.mxu0 %v951
    %993 = vmatprep.subr.mxu0 0.0
    %994 = vmatpush1.msra.mxu0 %v950
    %995 = vmatprep.subr.mxu0 0.0
    %996 = vmatpush1.msra.mxu0 %v949
    %997 = vmatprep.subr.mxu0 0.0
    %998 = vmatpush1.msra.mxu0 %v948
    %999 = vmatprep.subr.mxu0 0.0
    %1000 = vmatpush2.msra.mxu0 0.0
    %1001 = vmatprep.subr.mxu0 0.0
    %1002 = vmatpush2.msra.mxu0 0.0
    %1003 = vmatprep.subr.mxu0 0.0
    %1004 = vmatpush2.msra.mxu0 0.0
    %1005 = vmatprep.subr.mxu0 0.0
    %1006 = vmatpush2.msra.mxu0 0.0
    %1007 = vmatprep.subr.mxu0 0.0
    %1008 = vmatpush2.msra.mxu0 0.0
    %1009 = vmatprep.subr.mxu0 0.0
    %1010 = vmatpush2.msra.mxu0 0.0
    %1011 = vmatprep.subr.mxu0 0.0
    %1012 = vmatpush2.msra.mxu0 0.0
    %1013 = vmatprep.subr.mxu0 0.0
    %1014 = vmatpush2.msra.mxu0 0.0
    %1015 = vmatprep.subr.mxu0 0.0
    %1016 = vmatpush2.msra.mxu0 0.0
    %1017 = vmatprep.subr.mxu0 0.0
    %1018 = vmatpush2.msra.mxu0 0.0
    %1019 = vmatprep.subr.mxu0 0.0
    %1020 = vmatpush2.msra.mxu0 0.0
    %1021 = vmatprep.subr.mxu0 0.0
    %1022 = vmatpush2.msra.mxu0 0.0
    %1023 = vmatprep.subr.mxu0 0.0
    %1024 = vmatpush2.msra.mxu0 0.0
    %1025 = vmatprep.subr.mxu0 0.0
    %1026 = vmatpush2.msra.mxu0 0.0
    %1027 = vmatprep.subr.mxu0 0.0
    %1028 = vmatpush2.msra.mxu0 0.0
    %1029 = vmatprep.subr.mxu0 0.0
    %1030 = vmatpush2.msra.mxu0 0.0
    %1031 = vmatprep.mubr.f32.mxu0 0.0
    %1032 = vmatmul.mubr.f32.gmra.mxu0 %v965
    %v1033 = vpop.f32.mrf.mxu0
    %v1034 = vadd.f32 %v962, %v1033
    %v1035 = vpop.f32.mrf.mxu0
    %1036 = vdwg.mxu0
    %v1037 = vmax.f32 %v1034, 0.0
    %s1038 = scalar_lea.vmem %s4, 64
    %v1039 = vld [vmem:[%s1038] sm:$0xff]
    %v1040 = vld [vmem:[%s1038 + $0x8] sm:$0xff]
    %v1041 = vld [vmem:[%s1038 + $0x10] sm:$0xff]
    %v1042 = vld [vmem:[%s1038 + $0x18] sm:$0xff]
    %v1043 = vld [vmem:[%s1038 + $0x20] sm:$0xff]
    %v1044 = vld [vmem:[%s1038 + $0x28] sm:$0xff]
    %v1045 = vld [vmem:[%s1038 + $0x30] sm:$0xff]
    %v1046 = vld [vmem:[%s1038 + $0x38] sm:$0xff]
    %s1047 = scalar_lea.vmem %s6, 1
    %v1048 = vld [vmem:[%s1047] sm:$0x1]
    %v1050 = vlaneseq
    %v1051 = vshrl.u32 %v1050, 7
    %v1052 = vsub.s32 0, %v1051
    %v1053 = vrot.slane %v1048, %v1052
    %v1056 = vsel %vm150, %v1037, 0
    %1058 = vmatprep.subr.mxu0 0.0
    %1059 = vmatpush1.msra.mxu0 0.0
    %1060 = vmatprep.subr.mxu0 0.0
    %1061 = vmatpush1.msra.mxu0 0.0
    %1062 = vmatprep.subr.mxu0 0.0
    %1063 = vmatpush1.msra.mxu0 0.0
    %1064 = vmatprep.subr.mxu0 0.0
    %1065 = vmatpush1.msra.mxu0 0.0
    %1066 = vmatprep.subr.mxu0 0.0
    %1067 = vmatpush1.msra.mxu0 0.0
    %1068 = vmatprep.subr.mxu0 0.0
    %1069 = vmatpush1.msra.mxu0 0.0
    %1070 = vmatprep.subr.mxu0 0.0
    %1071 = vmatpush1.msra.mxu0 0.0
    %1072 = vmatprep.subr.mxu0 0.0
    %1073 = vmatpush1.msra.mxu0 0.0
    %1074 = vmatprep.subr.mxu0 0.0
    %1075 = vmatpush1.msra.mxu0 %v1046
    %1076 = vmatprep.subr.mxu0 0.0
    %1077 = vmatpush1.msra.mxu0 %v1045
    %1078 = vmatprep.subr.mxu0 0.0
    %1079 = vmatpush1.msra.mxu0 %v1044
    %1080 = vmatprep.subr.mxu0 0.0
    %1081 = vmatpush1.msra.mxu0 %v1043
    %1082 = vmatprep.subr.mxu0 0.0
    %1083 = vmatpush1.msra.mxu0 %v1042
    %1084 = vmatprep.subr.mxu0 0.0
    %1085 = vmatpush1.msra.mxu0 %v1041
    %1086 = vmatprep.subr.mxu0 0.0
    %1087 = vmatpush1.msra.mxu0 %v1040
    %1088 = vmatprep.subr.mxu0 0.0
    %1089 = vmatpush1.msra.mxu0 %v1039
    %1090 = vmatprep.subr.mxu0 0.0
    %1091 = vmatpush2.msra.mxu0 0.0
    %1092 = vmatprep.subr.mxu0 0.0
    %1093 = vmatpush2.msra.mxu0 0.0
    %1094 = vmatprep.subr.mxu0 0.0
    %1095 = vmatpush2.msra.mxu0 0.0
    %1096 = vmatprep.subr.mxu0 0.0
    %1097 = vmatpush2.msra.mxu0 0.0
    %1098 = vmatprep.subr.mxu0 0.0
    %1099 = vmatpush2.msra.mxu0 0.0
    %1100 = vmatprep.subr.mxu0 0.0
    %1101 = vmatpush2.msra.mxu0 0.0
    %1102 = vmatprep.subr.mxu0 0.0
    %1103 = vmatpush2.msra.mxu0 0.0
    %1104 = vmatprep.subr.mxu0 0.0
    %1105 = vmatpush2.msra.mxu0 0.0
    %1106 = vmatprep.subr.mxu0 0.0
    %1107 = vmatpush2.msra.mxu0 0.0
    %1108 = vmatprep.subr.mxu0 0.0
    %1109 = vmatpush2.msra.mxu0 0.0
    %1110 = vmatprep.subr.mxu0 0.0
    %1111 = vmatpush2.msra.mxu0 0.0
    %1112 = vmatprep.subr.mxu0 0.0
    %1113 = vmatpush2.msra.mxu0 0.0
    %1114 = vmatprep.subr.mxu0 0.0
    %1115 = vmatpush2.msra.mxu0 0.0
    %1116 = vmatprep.subr.mxu0 0.0
    %1117 = vmatpush2.msra.mxu0 0.0
    %1118 = vmatprep.subr.mxu0 0.0
    %1119 = vmatpush2.msra.mxu0 0.0
    %1120 = vmatprep.subr.mxu0 0.0
    %1121 = vmatpush2.msra.mxu0 0.0
    %1122 = vmatprep.mubr.f32.mxu0 0.0
    %1123 = vmatmul.mubr.f32.gmra.mxu0 %v1056
    %v1124 = vpop.f32.mrf.mxu0
    %v1125 = vadd.f32 %v1053, %v1124
    %v1126 = vpop.f32.mrf.mxu0
    %1127 = vdwg.mxu0
    %s1128 = scalar_lea.vmem %s4, 256
    %v1129 = vld [vmem:[%s1128] sm:$0xff]
    %v1130 = vld [vmem:[%s1128 + $0x8] sm:$0xff]
    %v1131 = vld [vmem:[%s1128 + $0x10] sm:$0xff]
    %v1132 = vld [vmem:[%s1128 + $0x18] sm:$0xff]
    %v1133 = vld [vmem:[%s1128 + $0x20] sm:$0xff]
    %v1134 = vld [vmem:[%s1128 + $0x28] sm:$0xff]
    %v1135 = vld [vmem:[%s1128 + $0x30] sm:$0xff]
    %v1136 = vld [vmem:[%s1128 + $0x38] sm:$0xff]
    %s1137 = scalar_lea.vmem %s6, 4
    %v1138 = vld [vmem:[%s1137] sm:$0x1]
    %v1140 = vlaneseq
    %v1141 = vshrl.u32 %v1140, 7
    %v1142 = vsub.s32 0, %v1141
    %v1143 = vrot.slane %v1138, %v1142
    %1145 = vmatprep.subr.mxu0 0.0
    %1146 = vmatpush1.msra.mxu0 0.0
    %1147 = vmatprep.subr.mxu0 0.0
    %1148 = vmatpush1.msra.mxu0 0.0
    %1149 = vmatprep.subr.mxu0 0.0
    %1150 = vmatpush1.msra.mxu0 0.0
    %1151 = vmatprep.subr.mxu0 0.0
    %1152 = vmatpush1.msra.mxu0 0.0
    %1153 = vmatprep.subr.mxu0 0.0
    %1154 = vmatpush1.msra.mxu0 0.0
    %1155 = vmatprep.subr.mxu0 0.0
    %1156 = vmatpush1.msra.mxu0 0.0
    %1157 = vmatprep.subr.mxu0 0.0
    %1158 = vmatpush1.msra.mxu0 0.0
    %1159 = vmatprep.subr.mxu0 0.0
    %1160 = vmatpush1.msra.mxu0 0.0
    %1161 = vmatprep.subr.mxu0 0.0
    %1162 = vmatpush1.msra.mxu0 %v1136
    %1163 = vmatprep.subr.mxu0 0.0
    %1164 = vmatpush1.msra.mxu0 %v1135
    %1165 = vmatprep.subr.mxu0 0.0
    %1166 = vmatpush1.msra.mxu0 %v1134
    %1167 = vmatprep.subr.mxu0 0.0
    %1168 = vmatpush1.msra.mxu0 %v1133
    %1169 = vmatprep.subr.mxu0 0.0
    %1170 = vmatpush1.msra.mxu0 %v1132
    %1171 = vmatprep.subr.mxu0 0.0
    %1172 = vmatpush1.msra.mxu0 %v1131
    %1173 = vmatprep.subr.mxu0 0.0
    %1174 = vmatpush1.msra.mxu0 %v1130
    %1175 = vmatprep.subr.mxu0 0.0
    %1176 = vmatpush1.msra.mxu0 %v1129
    %1177 = vmatprep.subr.mxu0 0.0
    %1178 = vmatpush2.msra.mxu0 0.0
    %1179 = vmatprep.subr.mxu0 0.0
    %1180 = vmatpush2.msra.mxu0 0.0
    %1181 = vmatprep.subr.mxu0 0.0
    %1182 = vmatpush2.msra.mxu0 0.0
    %1183 = vmatprep.subr.mxu0 0.0
    %1184 = vmatpush2.msra.mxu0 0.0
    %1185 = vmatprep.subr.mxu0 0.0
    %1186 = vmatpush2.msra.mxu0 0.0
    %1187 = vmatprep.subr.mxu0 0.0
    %1188 = vmatpush2.msra.mxu0 0.0
    %1189 = vmatprep.subr.mxu0 0.0
    %1190 = vmatpush2.msra.mxu0 0.0
    %1191 = vmatprep.subr.mxu0 0.0
    %1192 = vmatpush2.msra.mxu0 0.0
    %1193 = vmatprep.subr.mxu0 0.0
    %1194 = vmatpush2.msra.mxu0 0.0
    %1195 = vmatprep.subr.mxu0 0.0
    %1196 = vmatpush2.msra.mxu0 0.0
    %1197 = vmatprep.subr.mxu0 0.0
    %1198 = vmatpush2.msra.mxu0 0.0
    %1199 = vmatprep.subr.mxu0 0.0
    %1200 = vmatpush2.msra.mxu0 0.0
    %1201 = vmatprep.subr.mxu0 0.0
    %1202 = vmatpush2.msra.mxu0 0.0
    %1203 = vmatprep.subr.mxu0 0.0
    %1204 = vmatpush2.msra.mxu0 0.0
    %1205 = vmatprep.subr.mxu0 0.0
    %1206 = vmatpush2.msra.mxu0 0.0
    %1207 = vmatprep.subr.mxu0 0.0
    %1208 = vmatpush2.msra.mxu0 0.0
    %1209 = vmatprep.mubr.f32.mxu0 0.0
    %1210 = vmatmul.mubr.f32.gmra.mxu0 %v1056
    %v1211 = vpop.f32.mrf.mxu0
    %v1212 = vadd.f32 %v1143, %v1211
    %v1213 = vpop.f32.mrf.mxu0
    %1214 = vdwg.mxu0
    %v1215 = vmul.f32 %v1212, %v765
    %v1216 = vand.u32 2147483647, %v1215
    %v1217 = vadd.f32 %v1216, 1.0
    %v1218 = vrcp.pop %v1217
    %v1219 = vmul.f32 %v1212, %v1218
    %v1220 = vmul.f32 %v1219, 1.442695
    %v1221 = vpow.pop %v1220
    %v1222 = vmul.f32 %v774, %v1221
    %v1223 = vadd.f32 %v1222, %v1125
    %v1224 = vsel %vm775, %v1219, 0.0
    %1225 = vadd.xlane.f32.xlu0 %v1224
    %v1226 = vpop.xlane.xlu0 %1225
    %v1227 = vadd.f32 %v779, %v1226
    %s1228 = scalar_lea.vmem %s2, 24
    %v1229 = vld [vmem:[%s1228] sm:$0x1f]
    %s1230 = scalar_lea.vmem %s3, 384
    %v1231 = vld [vmem:[%s1230] sm:$0xff]
    %v1232 = vld [vmem:[%s1230 + $0x8] sm:$0xff]
    %v1233 = vld [vmem:[%s1230 + $0x10] sm:$0xff]
    %v1234 = vld [vmem:[%s1230 + $0x18] sm:$0xff]
    %v1235 = vld [vmem:[%s1230 + $0x20] sm:$0xff]
    %v1236 = vld [vmem:[%s1230 + $0x28] sm:$0xff]
    %v1237 = vld [vmem:[%s1230 + $0x30] sm:$0xff]
    %v1238 = vld [vmem:[%s1230 + $0x38] sm:$0xff]
    %1239 = vmatprep.subr.mxu0 0.0
    %1240 = vmatpush1.msra.mxu0 0.0
    %1241 = vmatprep.subr.mxu0 0.0
    %1242 = vmatpush1.msra.mxu0 0.0
    %1243 = vmatprep.subr.mxu0 0.0
    %1244 = vmatpush1.msra.mxu0 0.0
    %1245 = vmatprep.subr.mxu0 0.0
    %1246 = vmatpush1.msra.mxu0 0.0
    %1247 = vmatprep.subr.mxu0 0.0
    %1248 = vmatpush1.msra.mxu0 0.0
    %1249 = vmatprep.subr.mxu0 0.0
    %1250 = vmatpush1.msra.mxu0 0.0
    %1251 = vmatprep.subr.mxu0 0.0
    %1252 = vmatpush1.msra.mxu0 0.0
    %1253 = vmatprep.subr.mxu0 0.0
    %1254 = vmatpush1.msra.mxu0 0.0
    %1255 = vmatprep.subr.mxu0 0.0
    %1256 = vmatpush1.msra.mxu0 %v1238
    %1257 = vmatprep.subr.mxu0 0.0
    %1258 = vmatpush1.msra.mxu0 %v1237
    %1259 = vmatprep.subr.mxu0 0.0
    %1260 = vmatpush1.msra.mxu0 %v1236
    %1261 = vmatprep.subr.mxu0 0.0
    %1262 = vmatpush1.msra.mxu0 %v1235
    %1263 = vmatprep.subr.mxu0 0.0
    %1264 = vmatpush1.msra.mxu0 %v1234
    %1265 = vmatprep.subr.mxu0 0.0
    %1266 = vmatpush1.msra.mxu0 %v1233
    %1267 = vmatprep.subr.mxu0 0.0
    %1268 = vmatpush1.msra.mxu0 %v1232
    %1269 = vmatprep.subr.mxu0 0.0
    %1270 = vmatpush1.msra.mxu0 %v1231
    %1271 = vmatprep.subr.mxu0 0.0
    %1272 = vmatpush2.msra.mxu0 0.0
    %1273 = vmatprep.subr.mxu0 0.0
    %1274 = vmatpush2.msra.mxu0 0.0
    %1275 = vmatprep.subr.mxu0 0.0
    %1276 = vmatpush2.msra.mxu0 0.0
    %1277 = vmatprep.subr.mxu0 0.0
    %1278 = vmatpush2.msra.mxu0 0.0
    %1279 = vmatprep.subr.mxu0 0.0
    %1280 = vmatpush2.msra.mxu0 0.0
    %1281 = vmatprep.subr.mxu0 0.0
    %1282 = vmatpush2.msra.mxu0 0.0
    %1283 = vmatprep.subr.mxu0 0.0
    %1284 = vmatpush2.msra.mxu0 0.0
    %1285 = vmatprep.subr.mxu0 0.0
    %1286 = vmatpush2.msra.mxu0 0.0
    %1287 = vmatprep.subr.mxu0 0.0
    %1288 = vmatpush2.msra.mxu0 0.0
    %1289 = vmatprep.subr.mxu0 0.0
    %1290 = vmatpush2.msra.mxu0 0.0
    %1291 = vmatprep.subr.mxu0 0.0
    %1292 = vmatpush2.msra.mxu0 0.0
    %1293 = vmatprep.subr.mxu0 0.0
    %1294 = vmatpush2.msra.mxu0 0.0
    %1295 = vmatprep.subr.mxu0 0.0
    %1296 = vmatpush2.msra.mxu0 0.0
    %1297 = vmatprep.subr.mxu0 0.0
    %1298 = vmatpush2.msra.mxu0 0.0
    %1299 = vmatprep.subr.mxu0 0.0
    %1300 = vmatpush2.msra.mxu0 0.0
    %1301 = vmatprep.subr.mxu0 0.0
    %1302 = vmatpush2.msra.mxu0 0.0
    %1303 = vmatprep.mubr.f32.mxu0 0.0
    %1304 = vmatmul.mubr.f32.gmra.mxu0 %v341
    %v1305 = vpop.f32.mrf.mxu0
    %v1306 = vadd.f32 0.0, %v1305
    %v1307 = vpop.f32.mrf.mxu0
    %1308 = vdwg.mxu0
    %v1310 = vsel %vm49, %v1223, 0
    %v1313 = vsel %vm53, %v1229, 0
    %1315 = vmatprep.subr.mxu0 0.0
    %1316 = vmatpush1.msra.mxu0 0.0
    %1317 = vmatprep.subr.mxu0 0.0
    %1318 = vmatpush1.msra.mxu0 0.0
    %1319 = vmatprep.subr.mxu0 0.0
    %1320 = vmatpush1.msra.mxu0 0.0
    %1321 = vmatprep.subr.mxu0 0.0
    %1322 = vmatpush1.msra.mxu0 0.0
    %1323 = vmatprep.subr.mxu0 0.0
    %1324 = vmatpush1.msra.mxu0 0.0
    %1325 = vmatprep.subr.mxu0 0.0
    %1326 = vmatpush1.msra.mxu0 0.0
    %1327 = vmatprep.subr.mxu0 0.0
    %1328 = vmatpush1.msra.mxu0 0.0
    %1329 = vmatprep.subr.mxu0 0.0
    %1330 = vmatpush1.msra.mxu0 0.0
    %1331 = vmatprep.subr.mxu0 0.0
    %1332 = vmatpush1.msra.mxu0 0.0
    %1333 = vmatprep.subr.mxu0 0.0
    %1334 = vmatpush1.msra.mxu0 0.0
    %1335 = vmatprep.subr.mxu0 0.0
    %1336 = vmatpush1.msra.mxu0 0.0
    %1337 = vmatprep.subr.mxu0 0.0
    %1338 = vmatpush1.msra.mxu0 0.0
    %1339 = vmatprep.subr.mxu0 0.0
    %1340 = vmatpush1.msra.mxu0 0.0
    %1341 = vmatprep.subr.mxu0 0.0
    %1342 = vmatpush1.msra.mxu0 0.0
    %1343 = vmatprep.subr.mxu0 0.0
    %1344 = vmatpush1.msra.mxu0 0.0
    %1345 = vmatprep.subr.mxu0 0.0
    %1346 = vmatpush1.msra.mxu0 %v1313
    %1347 = vmatprep.subr.mxu0 0.0
    %1348 = vmatpush2.msra.mxu0 0.0
    %1349 = vmatprep.subr.mxu0 0.0
    %1350 = vmatpush2.msra.mxu0 0.0
    %1351 = vmatprep.subr.mxu0 0.0
    %1352 = vmatpush2.msra.mxu0 0.0
    %1353 = vmatprep.subr.mxu0 0.0
    %1354 = vmatpush2.msra.mxu0 0.0
    %1355 = vmatprep.subr.mxu0 0.0
    %1356 = vmatpush2.msra.mxu0 0.0
    %1357 = vmatprep.subr.mxu0 0.0
    %1358 = vmatpush2.msra.mxu0 0.0
    %1359 = vmatprep.subr.mxu0 0.0
    %1360 = vmatpush2.msra.mxu0 0.0
    %1361 = vmatprep.subr.mxu0 0.0
    %1362 = vmatpush2.msra.mxu0 0.0
    %1363 = vmatprep.subr.mxu0 0.0
    %1364 = vmatpush2.msra.mxu0 0.0
    %1365 = vmatprep.subr.mxu0 0.0
    %1366 = vmatpush2.msra.mxu0 0.0
    %1367 = vmatprep.subr.mxu0 0.0
    %1368 = vmatpush2.msra.mxu0 0.0
    %1369 = vmatprep.subr.mxu0 0.0
    %1370 = vmatpush2.msra.mxu0 0.0
    %1371 = vmatprep.subr.mxu0 0.0
    %1372 = vmatpush2.msra.mxu0 0.0
    %1373 = vmatprep.subr.mxu0 0.0
    %1374 = vmatpush2.msra.mxu0 0.0
    %1375 = vmatprep.subr.mxu0 0.0
    %1376 = vmatpush2.msra.mxu0 0.0
    %1377 = vmatprep.subr.mxu0 0.0
    %1378 = vmatpush2.msra.mxu0 0.0
    %1379 = vmatprep.mubr.f32.mxu0 0.0
    %1380 = vmatmul.mubr.f32.gmra.mxu0 %v1310
    %v1381 = vpop.f32.mrf.mxu0
    %v1382 = vadd.f32 %v1306, %v1381
    %v1383 = vpop.f32.mrf.mxu0
    %1384 = vdwg.mxu0
    %s1385 = scalar_lea.vmem [#allocation2], 7
    %v1386 = vld [vmem:[%s1385] sm:$0x1]
    %v1388 = vlaneseq
    %v1389 = vshrl.u32 %v1388, 7
    %v1390 = vsub.s32 0, %v1389
    %v1391 = vrot.slane %v1386, %v1390
    %v1393 = vadd.f32 %v1382, %v1391
    %v1394 = vmax.f32 %v1393, 0.0
    %s1395 = scalar_lea.vmem %s3, 448
    %v1396 = vld [vmem:[%s1395] sm:$0xff]
    %v1397 = vld [vmem:[%s1395 + $0x8] sm:$0xff]
    %v1398 = vld [vmem:[%s1395 + $0x10] sm:$0xff]
    %v1399 = vld [vmem:[%s1395 + $0x18] sm:$0xff]
    %v1400 = vld [vmem:[%s1395 + $0x20] sm:$0xff]
    %v1401 = vld [vmem:[%s1395 + $0x28] sm:$0xff]
    %v1402 = vld [vmem:[%s1395 + $0x30] sm:$0xff]
    %v1403 = vld [vmem:[%s1395 + $0x38] sm:$0xff]
    %s1404 = scalar_lea.vmem [#allocation2], 8
    %v1405 = vld [vmem:[%s1404] sm:$0x1]
    %v1407 = vlaneseq
    %v1408 = vshrl.u32 %v1407, 7
    %v1409 = vsub.s32 0, %v1408
    %v1410 = vrot.slane %v1405, %v1409
    %v1413 = vsel %vm150, %v1394, 0
    %1415 = vmatprep.subr.mxu0 0.0
    %1416 = vmatpush1.msra.mxu0 0.0
    %1417 = vmatprep.subr.mxu0 0.0
    %1418 = vmatpush1.msra.mxu0 0.0
    %1419 = vmatprep.subr.mxu0 0.0
    %1420 = vmatpush1.msra.mxu0 0.0
    %1421 = vmatprep.subr.mxu0 0.0
    %1422 = vmatpush1.msra.mxu0 0.0
    %1423 = vmatprep.subr.mxu0 0.0
    %1424 = vmatpush1.msra.mxu0 0.0
    %1425 = vmatprep.subr.mxu0 0.0
    %1426 = vmatpush1.msra.mxu0 0.0
    %1427 = vmatprep.subr.mxu0 0.0
    %1428 = vmatpush1.msra.mxu0 0.0
    %1429 = vmatprep.subr.mxu0 0.0
    %1430 = vmatpush1.msra.mxu0 0.0
    %1431 = vmatprep.subr.mxu0 0.0
    %1432 = vmatpush1.msra.mxu0 %v1403
    %1433 = vmatprep.subr.mxu0 0.0
    %1434 = vmatpush1.msra.mxu0 %v1402
    %1435 = vmatprep.subr.mxu0 0.0
    %1436 = vmatpush1.msra.mxu0 %v1401
    %1437 = vmatprep.subr.mxu0 0.0
    %1438 = vmatpush1.msra.mxu0 %v1400
    %1439 = vmatprep.subr.mxu0 0.0
    %1440 = vmatpush1.msra.mxu0 %v1399
    %1441 = vmatprep.subr.mxu0 0.0
    %1442 = vmatpush1.msra.mxu0 %v1398
    %1443 = vmatprep.subr.mxu0 0.0
    %1444 = vmatpush1.msra.mxu0 %v1397
    %1445 = vmatprep.subr.mxu0 0.0
    %1446 = vmatpush1.msra.mxu0 %v1396
    %1447 = vmatprep.subr.mxu0 0.0
    %1448 = vmatpush2.msra.mxu0 0.0
    %1449 = vmatprep.subr.mxu0 0.0
    %1450 = vmatpush2.msra.mxu0 0.0
    %1451 = vmatprep.subr.mxu0 0.0
    %1452 = vmatpush2.msra.mxu0 0.0
    %1453 = vmatprep.subr.mxu0 0.0
    %1454 = vmatpush2.msra.mxu0 0.0
    %1455 = vmatprep.subr.mxu0 0.0
    %1456 = vmatpush2.msra.mxu0 0.0
    %1457 = vmatprep.subr.mxu0 0.0
    %1458 = vmatpush2.msra.mxu0 0.0
    %1459 = vmatprep.subr.mxu0 0.0
    %1460 = vmatpush2.msra.mxu0 0.0
    %1461 = vmatprep.subr.mxu0 0.0
    %1462 = vmatpush2.msra.mxu0 0.0
    %1463 = vmatprep.subr.mxu0 0.0
    %1464 = vmatpush2.msra.mxu0 0.0
    %1465 = vmatprep.subr.mxu0 0.0
    %1466 = vmatpush2.msra.mxu0 0.0
    %1467 = vmatprep.subr.mxu0 0.0
    %1468 = vmatpush2.msra.mxu0 0.0
    %1469 = vmatprep.subr.mxu0 0.0
    %1470 = vmatpush2.msra.mxu0 0.0
    %1471 = vmatprep.subr.mxu0 0.0
    %1472 = vmatpush2.msra.mxu0 0.0
    %1473 = vmatprep.subr.mxu0 0.0
    %1474 = vmatpush2.msra.mxu0 0.0
    %1475 = vmatprep.subr.mxu0 0.0
    %1476 = vmatpush2.msra.mxu0 0.0
    %1477 = vmatprep.subr.mxu0 0.0
    %1478 = vmatpush2.msra.mxu0 0.0
    %1479 = vmatprep.mubr.f32.mxu0 0.0
    %1480 = vmatmul.mubr.f32.gmra.mxu0 %v1413
    %v1481 = vpop.f32.mrf.mxu0
    %v1482 = vadd.f32 %v1410, %v1481
    %v1483 = vpop.f32.mrf.mxu0
    %1484 = vdwg.mxu0
    %v1485 = vmax.f32 %v1482, 0.0
    %s1486 = scalar_lea.vmem %s4, 128
    %v1487 = vld [vmem:[%s1486] sm:$0xff]
    %v1488 = vld [vmem:[%s1486 + $0x8] sm:$0xff]
    %v1489 = vld [vmem:[%s1486 + $0x10] sm:$0xff]
    %v1490 = vld [vmem:[%s1486 + $0x18] sm:$0xff]
    %v1491 = vld [vmem:[%s1486 + $0x20] sm:$0xff]
    %v1492 = vld [vmem:[%s1486 + $0x28] sm:$0xff]
    %v1493 = vld [vmem:[%s1486 + $0x30] sm:$0xff]
    %v1494 = vld [vmem:[%s1486 + $0x38] sm:$0xff]
    %s1495 = scalar_lea.vmem %s6, 2
    %v1496 = vld [vmem:[%s1495] sm:$0x1]
    %v1498 = vlaneseq
    %v1499 = vshrl.u32 %v1498, 7
    %v1500 = vsub.s32 0, %v1499
    %v1501 = vrot.slane %v1496, %v1500
    %v1504 = vsel %vm150, %v1485, 0
    %1506 = vmatprep.subr.mxu0 0.0
    %1507 = vmatpush1.msra.mxu0 0.0
    %1508 = vmatprep.subr.mxu0 0.0
    %1509 = vmatpush1.msra.mxu0 0.0
    %1510 = vmatprep.subr.mxu0 0.0
    %1511 = vmatpush1.msra.mxu0 0.0
    %1512 = vmatprep.subr.mxu0 0.0
    %1513 = vmatpush1.msra.mxu0 0.0
    %1514 = vmatprep.subr.mxu0 0.0
    %1515 = vmatpush1.msra.mxu0 0.0
    %1516 = vmatprep.subr.mxu0 0.0
    %1517 = vmatpush1.msra.mxu0 0.0
    %1518 = vmatprep.subr.mxu0 0.0
    %1519 = vmatpush1.msra.mxu0 0.0
    %1520 = vmatprep.subr.mxu0 0.0
    %1521 = vmatpush1.msra.mxu0 0.0
    %1522 = vmatprep.subr.mxu0 0.0
    %1523 = vmatpush1.msra.mxu0 %v1494
    %1524 = vmatprep.subr.mxu0 0.0
    %1525 = vmatpush1.msra.mxu0 %v1493
    %1526 = vmatprep.subr.mxu0 0.0
    %1527 = vmatpush1.msra.mxu0 %v1492
    %1528 = vmatprep.subr.mxu0 0.0
    %1529 = vmatpush1.msra.mxu0 %v1491
    %1530 = vmatprep.subr.mxu0 0.0
    %1531 = vmatpush1.msra.mxu0 %v1490
    %1532 = vmatprep.subr.mxu0 0.0
    %1533 = vmatpush1.msra.mxu0 %v1489
    %1534 = vmatprep.subr.mxu0 0.0
    %1535 = vmatpush1.msra.mxu0 %v1488
    %1536 = vmatprep.subr.mxu0 0.0
    %1537 = vmatpush1.msra.mxu0 %v1487
    %1538 = vmatprep.subr.mxu0 0.0
    %1539 = vmatpush2.msra.mxu0 0.0
    %1540 = vmatprep.subr.mxu0 0.0
    %1541 = vmatpush2.msra.mxu0 0.0
    %1542 = vmatprep.subr.mxu0 0.0
    %1543 = vmatpush2.msra.mxu0 0.0
    %1544 = vmatprep.subr.mxu0 0.0
    %1545 = vmatpush2.msra.mxu0 0.0
    %1546 = vmatprep.subr.mxu0 0.0
    %1547 = vmatpush2.msra.mxu0 0.0
    %1548 = vmatprep.subr.mxu0 0.0
    %1549 = vmatpush2.msra.mxu0 0.0
    %1550 = vmatprep.subr.mxu0 0.0
    %1551 = vmatpush2.msra.mxu0 0.0
    %1552 = vmatprep.subr.mxu0 0.0
    %1553 = vmatpush2.msra.mxu0 0.0
    %1554 = vmatprep.subr.mxu0 0.0
    %1555 = vmatpush2.msra.mxu0 0.0
    %1556 = vmatprep.subr.mxu0 0.0
    %1557 = vmatpush2.msra.mxu0 0.0
    %1558 = vmatprep.subr.mxu0 0.0
    %1559 = vmatpush2.msra.mxu0 0.0
    %1560 = vmatprep.subr.mxu0 0.0
    %1561 = vmatpush2.msra.mxu0 0.0
    %1562 = vmatprep.subr.mxu0 0.0
    %1563 = vmatpush2.msra.mxu0 0.0
    %1564 = vmatprep.subr.mxu0 0.0
    %1565 = vmatpush2.msra.mxu0 0.0
    %1566 = vmatprep.subr.mxu0 0.0
    %1567 = vmatpush2.msra.mxu0 0.0
    %1568 = vmatprep.subr.mxu0 0.0
    %1569 = vmatpush2.msra.mxu0 0.0
    %1570 = vmatprep.mubr.f32.mxu0 0.0
    %1571 = vmatmul.mubr.f32.gmra.mxu0 %v1504
    %v1572 = vpop.f32.mrf.mxu0
    %v1573 = vadd.f32 %v1501, %v1572
    %v1574 = vpop.f32.mrf.mxu0
    %1575 = vdwg.mxu0
    %s1576 = scalar_lea.vmem %s4, 320
    %v1577 = vld [vmem:[%s1576] sm:$0xff]
    %v1578 = vld [vmem:[%s1576 + $0x8] sm:$0xff]
    %v1579 = vld [vmem:[%s1576 + $0x10] sm:$0xff]
    %v1580 = vld [vmem:[%s1576 + $0x18] sm:$0xff]
    %v1581 = vld [vmem:[%s1576 + $0x20] sm:$0xff]
    %v1582 = vld [vmem:[%s1576 + $0x28] sm:$0xff]
    %v1583 = vld [vmem:[%s1576 + $0x30] sm:$0xff]
    %v1584 = vld [vmem:[%s1576 + $0x38] sm:$0xff]
    %s1585 = scalar_lea.vmem %s6, 5
    %v1586 = vld [vmem:[%s1585] sm:$0x1]
    %v1588 = vlaneseq
    %v1589 = vshrl.u32 %v1588, 7
    %v1590 = vsub.s32 0, %v1589
    %v1591 = vrot.slane %v1586, %v1590
    %1593 = vmatprep.subr.mxu0 0.0
    %1594 = vmatpush1.msra.mxu0 0.0
    %1595 = vmatprep.subr.mxu0 0.0
    %1596 = vmatpush1.msra.mxu0 0.0
    %1597 = vmatprep.subr.mxu0 0.0
    %1598 = vmatpush1.msra.mxu0 0.0
    %1599 = vmatprep.subr.mxu0 0.0
    %1600 = vmatpush1.msra.mxu0 0.0
    %1601 = vmatprep.subr.mxu0 0.0
    %1602 = vmatpush1.msra.mxu0 0.0
    %1603 = vmatprep.subr.mxu0 0.0
    %1604 = vmatpush1.msra.mxu0 0.0
    %1605 = vmatprep.subr.mxu0 0.0
    %1606 = vmatpush1.msra.mxu0 0.0
    %1607 = vmatprep.subr.mxu0 0.0
    %1608 = vmatpush1.msra.mxu0 0.0
    %1609 = vmatprep.subr.mxu0 0.0
    %1610 = vmatpush1.msra.mxu0 %v1584
    %1611 = vmatprep.subr.mxu0 0.0
    %1612 = vmatpush1.msra.mxu0 %v1583
    %1613 = vmatprep.subr.mxu0 0.0
    %1614 = vmatpush1.msra.mxu0 %v1582
    %1615 = vmatprep.subr.mxu0 0.0
    %1616 = vmatpush1.msra.mxu0 %v1581
    %1617 = vmatprep.subr.mxu0 0.0
    %1618 = vmatpush1.msra.mxu0 %v1580
    %1619 = vmatprep.subr.mxu0 0.0
    %1620 = vmatpush1.msra.mxu0 %v1579
    %1621 = vmatprep.subr.mxu0 0.0
    %1622 = vmatpush1.msra.mxu0 %v1578
    %1623 = vmatprep.subr.mxu0 0.0
    %1624 = vmatpush1.msra.mxu0 %v1577
    %1625 = vmatprep.subr.mxu0 0.0
    %1626 = vmatpush2.msra.mxu0 0.0
    %1627 = vmatprep.subr.mxu0 0.0
    %1628 = vmatpush2.msra.mxu0 0.0
    %1629 = vmatprep.subr.mxu0 0.0
    %1630 = vmatpush2.msra.mxu0 0.0
    %1631 = vmatprep.subr.mxu0 0.0
    %1632 = vmatpush2.msra.mxu0 0.0
    %1633 = vmatprep.subr.mxu0 0.0
    %1634 = vmatpush2.msra.mxu0 0.0
    %1635 = vmatprep.subr.mxu0 0.0
    %1636 = vmatpush2.msra.mxu0 0.0
    %1637 = vmatprep.subr.mxu0 0.0
    %1638 = vmatpush2.msra.mxu0 0.0
    %1639 = vmatprep.subr.mxu0 0.0
    %1640 = vmatpush2.msra.mxu0 0.0
    %1641 = vmatprep.subr.mxu0 0.0
    %1642 = vmatpush2.msra.mxu0 0.0
    %1643 = vmatprep.subr.mxu0 0.0
    %1644 = vmatpush2.msra.mxu0 0.0
    %1645 = vmatprep.subr.mxu0 0.0
    %1646 = vmatpush2.msra.mxu0 0.0
    %1647 = vmatprep.subr.mxu0 0.0
    %1648 = vmatpush2.msra.mxu0 0.0
    %1649 = vmatprep.subr.mxu0 0.0
    %1650 = vmatpush2.msra.mxu0 0.0
    %1651 = vmatprep.subr.mxu0 0.0
    %1652 = vmatpush2.msra.mxu0 0.0
    %1653 = vmatprep.subr.mxu0 0.0
    %1654 = vmatpush2.msra.mxu0 0.0
    %1655 = vmatprep.subr.mxu0 0.0
    %1656 = vmatpush2.msra.mxu0 0.0
    %1657 = vmatprep.mubr.f32.mxu0 0.0
    %1658 = vmatmul.mubr.f32.gmra.mxu0 %v1504
    %v1659 = vpop.f32.mrf.mxu0
    %v1660 = vadd.f32 %v1591, %v1659
    %v1661 = vpop.f32.mrf.mxu0
    %1662 = vdwg.mxu0
    %v1663 = vmul.f32 %v1660, %v765
    %v1664 = vand.u32 2147483647, %v1663
    %v1665 = vadd.f32 %v1664, 1.0
    %v1666 = vrcp.pop %v1665
    %v1667 = vmul.f32 %v1660, %v1666
    %v1668 = vmul.f32 %v1667, 1.442695
    %v1669 = vpow.pop %v1668
    %v1670 = vmul.f32 %v1223, %v1669
    %v1671 = vadd.f32 %v1670, %v1573
    %v1672 = vsel %vm775, %v1667, 0.0
    %1673 = vadd.xlane.f32.xlu0 %v1672
    %v1674 = vpop.xlane.xlu0 %1673
    %v1675 = vadd.f32 %v1227, %v1674
    %v1676 = vmul.f32 %v1671, %v1671
    %v1677 = vsel %vm775, %v1676, 0.0
    %1678 = vadd.xlane.f32.xlu0 %v1677
    %v1679 = vpop.xlane.xlu0 %1678
    %v1680 = vmul.f32 %v1679, -0.5
    %v1681 = vsub.f32 %v1680, 4.5946927
    %v1682 = vadd.f32 %v1681, %v1675
    %vm1683 = vcmask 1024
    %1684 = vst.msk [vmem:[%s7] sm:$0x3] %vm1683, %v1682
    // Predicated region
    $region34: #{nf_jumptime_forward.1} parent=1 // pred_check
      _
    $region35: #{nf_jumptime_forward.1} parent=1 // pred_check_branch
      %1686 = sbr.rel (0) target = $region37
    $region36: #{nf_jumptime_forward.1} parent=1 // pred_region
      _
    $region37: #{nf_jumptime_forward.1} parent=1 // pred_fallthru
      _
    // Predicated region
    $region38: #{nf_jumptime_forward.1} parent=1 // pred_check
      _
    $region39: #{nf_jumptime_forward.1} parent=1 // pred_check_branch
      %1688 = sbr.rel (0) target = $region41
    $region40: #{nf_jumptime_forward.1} parent=1 // pred_region
      _
    $region41: #{nf_jumptime_forward.1} parent=1 // pred_fallthru
      _
    %1689 = vsyncpa [#allocation3], 1

</llo_original>
